<compile_context>
chip_gen: v7x
topology: tpu7x:2x2x1
jax: 0.10.0
libtpu: 0.0.40
codegen_flags: <defaults>
</compile_context>

<pallas_src>
import functools

import jax
import jax.numpy as jnp
from jax import lax
from jax.experimental import pallas as pl
from jax.experimental.pallas import tpu as pltpu


def _round_up(a: int, b: int) -> int:
    return -(-a // b) * b


# --------------------------------------------------------------------------
# Kernels
# --------------------------------------------------------------------------
def _ln_rows_kernel(x_ref, w_ref, o_ref, *, eps: float, dh: int, lane_width: int):
    """One logical row per lane-row.  lane_width is a multiple of 128; when
    lane_width > dh the extra lanes are zero-padded in HBM (mean stays exact)
    and masked out of the centered variance."""
    x = x_ref[...].astype(jnp.float32)                       # (TR, lane_width)
    inv_dh = 1.0 / dh
    mean = jnp.sum(x, axis=-1, keepdims=True) * inv_dh       # pad lanes are 0
    xc = x - mean
    if dh != lane_width:
        lane = lax.broadcasted_iota(jnp.int32, x.shape, 1)
        xcv = jnp.where(lane < dh, xc, 0.0)
    else:
        xcv = xc
    var = jnp.sum(xcv * xcv, axis=-1, keepdims=True) * inv_dh
    inv = lax.rsqrt(var + eps)
    w = w_ref[...].astype(jnp.float32)                       # (1, lane_width)
    o_ref[...] = (xc * inv * w).astype(o_ref.dtype)


def _ln_packed_kernel(x_ref, p_ref, pt_ref, ptw_ref, o_ref, *, eps: float):
    """Lane-packed path: each 128-lane row holds n_seg logical rows of width
    DH (n_seg * DH == 128).  Segment statistics are computed / broadcast via
    MXU matmuls against constant indicator matrices:
      p   (128, n_seg): 1/DH on a lane's own segment column, else 0
      pt  (n_seg, 128): 1       on a segment's own lanes, else 0
      ptw (n_seg, 128): w_eff[lane] on a segment's own lanes, else 0
    so the VPU only does ~4 full-width passes per block."""
    x = x_ref[...].astype(jnp.float32)                       # (TR, 128)
    p = p_ref[...]
    mean_seg = jnp.dot(x, p, precision=lax.Precision.HIGHEST,
                       preferred_element_type=jnp.float32)   # (TR, n_seg)
    mean_full = jnp.dot(mean_seg, pt_ref[...],
                        precision=lax.Precision.HIGHEST,
                        preferred_element_type=jnp.float32)  # (TR, 128)
    xc = x - mean_full
    var_seg = jnp.dot(xc * xc, p, precision=lax.Precision.HIGHEST,
                      preferred_element_type=jnp.float32)    # (TR, n_seg)
    invw_full = jnp.dot(lax.rsqrt(var_seg + eps), ptw_ref[...],
                        precision=lax.Precision.HIGHEST,
                        preferred_element_type=jnp.float32)  # (TR, 128), weight folded in
    o_ref[...] = (xc * invw_full).astype(o_ref.dtype)


# --------------------------------------------------------------------------
# Tiling / VMEM heuristics
# --------------------------------------------------------------------------
def _vmem_budget() -> int:
    try:
        cap = pltpu.get_tpu_info().vmem_capacity_bytes
    except Exception:
        cap = 64 * 1024 * 1024          # conservative: v7x per-TensorCore VMEM
    return min(int(cap * 0.85), 100 * 1024 * 1024)


def _pick_tile_rows(rows: int, lane_width: int, itemsize: int,
                    target_block_bytes: int, vmem_budget: int) -> int:
    sublane = max(8, 32 // max(itemsize, 1))        # 8 f32 / 16 bf16 / 32 int8
    tr = max(1, target_block_bytes // (lane_width * itemsize))
    # >= 4 grid steps when possible: >= 2 steps per v7x TensorCore so the
    # megacore-sharded grid still overlaps DMA-in/compute/DMA-out per core.
    tr = min(tr, pl.cdiv(rows, 4))
    # VMEM cap: double-buffered in/out blocks at the I/O dtype plus ~3
    # full-width f32 temporaries (upcast x, centered x, square/normalize).
    row_cost = 4 * lane_width * itemsize + 3 * lane_width * 4
    overhead = (2 << 20) + (512 << 10)
    tr = min(tr, max(1, (vmem_budget - overhead) // row_cost))
    tr = max(sublane, (tr // sublane) * sublane)
    return min(tr, _round_up(rows, sublane))


# --------------------------------------------------------------------------
# Wrapper
# --------------------------------------------------------------------------
def layer_norm_pallas(x, weight, *, eps: float = 1e-5, residual_weight: bool = True,
                      target_block_bytes: int = 8 * 1024 * 1024):
    """x: (B, NH, S, DH); weight: (DH,) raw parameter (zeros-init => eff weight 1)."""
    B, NH, S, DH = x.shape
    rows = B * NH * S
    dtype = x.dtype
    itemsize = jnp.dtype(dtype).itemsize

    w_eff = ((1.0 + weight) if residual_weight else weight).astype(jnp.float32)

    packed = (DH < 128) and (128 % DH == 0)

    if packed:
        # Lane-dense packing: n_seg consecutive logical rows per 128-lane row.
        n_seg = 128 // DH
        lane_width = 128
        rows_pad = _round_up(rows, n_seg)
        x2 = x.reshape(rows, DH)
        if rows_pad != rows:
            x2 = jnp.pad(x2, ((0, rows_pad - rows), (0, 0)))
        rows_eff = rows_pad // n_seg
        x2 = x2.reshape(rows_eff, lane_width)               # contiguous reshape

        seg = jnp.arange(lane_width, dtype=jnp.int32) // DH
        onehot = (seg[:, None] == jnp.arange(n_seg, dtype=jnp.int32)[None, :]
                  ).astype(jnp.float32)                      # (128, n_seg)
        p_mat = onehot * (1.0 / DH)                          # reduce -> per-seg mean
        pt_mat = onehot.T                                    # broadcast back
        ptw_mat = pt_mat * jnp.tile(w_eff, n_seg)[None, :]   # broadcast * weight

        kernel = functools.partial(_ln_packed_kernel, eps=float(eps))
        extra_inputs = (p_mat, pt_mat, ptw_mat)
        extra_specs = [
            pl.BlockSpec((lane_width, n_seg), lambda i: (0, 0)),
            pl.BlockSpec((n_seg, lane_width), lambda i: (0, 0)),
            pl.BlockSpec((n_seg, lane_width), lambda i: (0, 0)),
        ]
    else:
        # One logical row per lane-row; pad lanes to a multiple of 128 so
        # stores are always unmasked full-lane ops.
        lane_width = _round_up(DH, 128)
        rows_eff = rows
        x2 = x.reshape(rows, DH)
        w2 = w_eff
        if lane_width != DH:
            x2 = jnp.pad(x2, ((0, 0), (0, lane_width - DH)))
            w2 = jnp.pad(w_eff, (0, lane_width - DH))
        w2 = w2.reshape(1, lane_width)

        kernel = functools.partial(_ln_rows_kernel, eps=float(eps), dh=DH,
                                   lane_width=lane_width)
        extra_inputs = (w2,)
        extra_specs = [pl.BlockSpec((1, lane_width), lambda i: (0, 0))]

    budget = _vmem_budget()
    tile_rows = _pick_tile_rows(rows_eff, lane_width, itemsize,
                                target_block_bytes, budget)
    grid = (pl.cdiv(rows_eff, tile_rows),)
    vmem_limit = int(max(budget, 32 * 1024 * 1024))   # v5e scoped default is 16 MiB

    x_spec = pl.BlockSpec((tile_rows, lane_width), lambda i: (i, 0))
    o_spec = pl.BlockSpec((tile_rows, lane_width), lambda i: (i, 0))

    out2 = pl.pallas_call(
        kernel,
        out_shape=jax.ShapeDtypeStruct((rows_eff, lane_width), dtype),
        grid=grid,
        in_specs=[x_spec] + extra_specs,
        out_specs=o_spec,
        compiler_params=pltpu.CompilerParams(
            dimension_semantics=("parallel",),
            vmem_limit_bytes=vmem_limit),
    )(x2, *extra_inputs)

    if packed:
        out = out2.reshape(rows_pad, DH)
        if rows_pad != rows:
            out = out[:rows]
    else:
        out = out2
        if lane_width != DH:
            out = out[:, :DH]
    return out.reshape(B, NH, S, DH)


# --------------------------------------------------------------------------
# Reference
# --------------------------------------------------------------------------
def layer_norm_ref(x, weight, *, eps: float = 1e-5, residual_weight: bool = True):
    xf = x.astype(jnp.float32)
    mean = jnp.mean(xf, axis=-1, keepdims=True)
    var = jnp.mean(jnp.square(xf - mean), axis=-1, keepdims=True)
    w_eff = ((1.0 + weight) if residual_weight else weight).astype(jnp.float32)
    return ((xf - mean) * lax.rsqrt(var + eps) * w_eff).astype(x.dtype)


if __name__ == "__main__":
    key = jax.random.PRNGKey(0)
    ks = jax.random.split(key, 8)

    # Module-consistent shape: (B, NH, S, DH); weight param zero-init
    # (residual_weight=True => effective weight 1.0), bias=False.
    B, NH, S, DH = 2, 4, 8, 32
    x = jax.random.normal(ks[0], (B, NH, S, DH), dtype=jnp.float32)
    w0 = jnp.zeros((DH,), dtype=jnp.float32)
    y = jax.block_until_ready(layer_norm_pallas(x, w0))
    assert y.shape == x.shape and y.dtype == x.dtype
    assert jnp.allclose(y, layer_norm_ref(x, w0), atol=1e-5, rtol=1e-5), \
        "packed path (DH=32) mismatch"

    # Packed path, row count NOT divisible by the packing factor, real weight.
    x_odd = jax.random.normal(ks[1], (1, 3, 5, 32), dtype=jnp.float32)
    w_odd = 0.1 * jax.random.normal(ks[2], (32,), dtype=jnp.float32)
    y_odd = jax.block_until_ready(layer_norm_pallas(x_odd, w_odd))
    assert jnp.allclose(y_odd, layer_norm_ref(x_odd, w_odd), atol=1e-5, rtol=1e-5), \
        "packed path (odd rows) mismatch"

    # Packed path with packing factor > 8 (DH=8 -> n_seg=16; cap lifted).
    x_small = jax.random.normal(ks[3], (2, 2, 8, 8), dtype=jnp.float32)
    w_small = 0.05 * jax.random.normal(ks[4], (8,), dtype=jnp.float32)
    y_small = jax.block_until_ready(layer_norm_pallas(x_small, w_small))
    assert jnp.allclose(y_small, layer_norm_ref(x_small, w_small),
                        atol=1e-5, rtol=1e-5), "packed path (DH=8) mismatch"

    # Row path, DH a multiple of 128.
    x_big = jax.random.normal(ks[5], (2, 2, 8, 256), dtype=jnp.float32)
    w_big = 0.1 * jax.random.normal(ks[6], (256,), dtype=jnp.float32)
    y_big = jax.block_until_ready(layer_norm_pallas(x_big, w_big))
    assert jnp.allclose(y_big, layer_norm_ref(x_big, w_big), atol=1e-5, rtol=1e-5), \
        "row path (DH=256) mismatch"

    # Row path with lane padding (DH >= 128 but not a multiple of 128).
    x_pad = jax.random.normal(ks[7], (1, 2, 8, 192), dtype=jnp.float32)
    w_pad = jnp.zeros((192,), dtype=jnp.float32)
    y_pad = jax.block_until_ready(layer_norm_pallas(x_pad, w_pad))
    assert jnp.allclose(y_pad, layer_norm_ref(x_pad, w_pad), atol=1e-5, rtol=1e-5), \
        "row path (DH=192, lane pad) mismatch"

    # bf16 I/O (halves HBM traffic; compute stays f32 in-kernel).
    x_bf = x.astype(jnp.bfloat16)
    y_bf = jax.block_until_ready(layer_norm_pallas(x_bf, w0))
    assert y_bf.dtype == jnp.bfloat16
    assert jnp.allclose(y_bf.astype(jnp.float32),
                        layer_norm_ref(x_bf, w0).astype(jnp.float32),
                        atol=3e-2, rtol=3e-2), "bf16 path mismatch"

    print("KERNEL_OK")
</pallas_src>

<mosaic_0001>
module attributes {stable_mosaic.version = 11 : i64} {
  func.func @_ln_packed_kernel(%arg0: i32, %arg1: memref<8x128xf32, #tpu.memory_space<vmem>>, %arg2: memref<128x4xf32, #tpu.memory_space<vmem>>, %arg3: memref<4x128xf32, #tpu.memory_space<vmem>>, %arg4: memref<4x128xf32, #tpu.memory_space<vmem>>, %arg5: memref<8x128xf32, #tpu.memory_space<vmem>>) attributes {dimension_semantics = [#tpu.dimension_semantics<parallel>], iteration_bounds = array<i64: 2>, scalar_prefetch = 0 : i64, scratch_operands = 0 : i64, tpu.core_type = #tpu.core_type<tc>, window_params = [{transform_indices = @transform_0, window_bounds = array<i64: 8, 128>}, {pipeline_mode = #tpu.pipeline_mode<synchronous>, transform_indices = @transform_1, window_bounds = array<i64: 128, 4>}, {pipeline_mode = #tpu.pipeline_mode<synchronous>, transform_indices = @transform_2, window_bounds = array<i64: 4, 128>}, {pipeline_mode = #tpu.pipeline_mode<synchronous>, transform_indices = @transform_3, window_bounds = array<i64: 4, 128>}, {transform_indices = @transform_4, window_bounds = array<i64: 8, 128>}]} {
    %c0 = arith.constant 0 : index
    %c0_0 = arith.constant 0 : index
    %0 = vector.load %arg1[%c0, %c0_0] : memref<8x128xf32, #tpu.memory_space<vmem>>, vector<8x128xf32>
    %c0_1 = arith.constant 0 : index
    %c0_2 = arith.constant 0 : index
    %1 = vector.load %arg2[%c0_1, %c0_2] : memref<128x4xf32, #tpu.memory_space<vmem>>, vector<128x4xf32>
    %cst = arith.constant dense<0.000000e+00> : vector<8x4xf32>
    %2 = tpu.matmul %0, %1, %cst {dimension_numbers = #tpu.dot_dimension_numbers<[1], [0], [0], [1], [0, 0, 1, 1], [], []>, precision = #tpu.contract_precision<fp32>} : vector<8x128xf32>, vector<128x4xf32>, vector<8x4xf32> -> vector<8x4xf32>
    %c0_3 = arith.constant 0 : index
    %c0_4 = arith.constant 0 : index
    %3 = vector.load %arg3[%c0_3, %c0_4] : memref<4x128xf32, #tpu.memory_space<vmem>>, vector<4x128xf32>
    %cst_5 = arith.constant dense<0.000000e+00> : vector<8x128xf32>
    %4 = tpu.matmul %2, %3, %cst_5 {dimension_numbers = #tpu.dot_dimension_numbers<[1], [0], [0], [1], [0, 0, 1, 1], [], []>, precision = #tpu.contract_precision<fp32>} : vector<8x4xf32>, vector<4x128xf32>, vector<8x128xf32> -> vector<8x128xf32>
    %5 = arith.subf %0, %4 : vector<8x128xf32>
    %6 = arith.mulf %5, %5 : vector<8x128xf32>
    %cst_6 = arith.constant dense<0.000000e+00> : vector<8x4xf32>
    %7 = tpu.matmul %6, %1, %cst_6 {dimension_numbers = #tpu.dot_dimension_numbers<[1], [0], [0], [1], [0, 0, 1, 1], [], []>, precision = #tpu.contract_precision<fp32>} : vector<8x128xf32>, vector<128x4xf32>, vector<8x4xf32> -> vector<8x4xf32>
    %cst_7 = arith.constant 9.99999974E-6 : f32
    %8 = vector.broadcast %cst_7 : f32 to vector<8x4xf32>
    %9 = arith.addf %7, %8 : vector<8x4xf32>
    %10 = math.rsqrt %9 : vector<8x4xf32>
    %c0_8 = arith.constant 0 : index
    %c0_9 = arith.constant 0 : index
    %11 = vector.load %arg4[%c0_8, %c0_9] : memref<4x128xf32, #tpu.memory_space<vmem>>, vector<4x128xf32>
    %cst_10 = arith.constant dense<0.000000e+00> : vector<8x128xf32>
    %12 = tpu.matmul %10, %11, %cst_10 {dimension_numbers = #tpu.dot_dimension_numbers<[1], [0], [0], [1], [0, 0, 1, 1], [], []>, precision = #tpu.contract_precision<fp32>} : vector<8x4xf32>, vector<4x128xf32>, vector<8x128xf32> -> vector<8x128xf32>
    %13 = arith.mulf %5, %12 : vector<8x128xf32>
    %c0_11 = arith.constant 0 : index
    %c0_12 = arith.constant 0 : index
    %14 = vector.load %arg5[%c0_11, %c0_12] : memref<8x128xf32, #tpu.memory_space<vmem>>, vector<8x128xf32>
    tpu.vector_store %arg5[%c0_11, %c0_12], %13 {strides = array<i32>} : memref<8x128xf32, #tpu.memory_space<vmem>>, vector<8x128xf32>,
    return
  }
  func.func @transform_0(%arg0: i32) -> (i32, i32) {
    %c0_i32 = arith.constant 0 : i32
    %c0_i32_0 = arith.constant 0 : i32
    return %arg0, %c0_i32 : i32, i32
  }
  func.func @transform_1(%arg0: i32) -> (i32, i32) {
    %c0_i32 = arith.constant 0 : i32
    %c0_i32_0 = arith.constant 0 : i32
    %c0_i32_1 = arith.constant 0 : i32
    return %c0_i32, %c0_i32_0 : i32, i32
  }
  func.func @transform_2(%arg0: i32) -> (i32, i32) {
    %c0_i32 = arith.constant 0 : i32
    %c0_i32_0 = arith.constant 0 : i32
    %c0_i32_1 = arith.constant 0 : i32
    return %c0_i32, %c0_i32_0 : i32, i32
  }
  func.func @transform_3(%arg0: i32) -> (i32, i32) {
    %c0_i32 = arith.constant 0 : i32
    %c0_i32_0 = arith.constant 0 : i32
    %c0_i32_1 = arith.constant 0 : i32
    return %c0_i32, %c0_i32_0 : i32, i32
  }
  func.func @transform_4(%arg0: i32) -> (i32, i32) {
    %c0_i32 = arith.constant 0 : i32
    %c0_i32_0 = arith.constant 0 : i32
    return %arg0, %c0_i32 : i32, i32
  }
}

</mosaic_0001>

<llo_original>
// kernel: tpu_custom_call.1
$region0: #{tpu_custom_call.1}
  #allocation0 [shape = 'u32[]', space=smem, size = 0x4, offset = 0x4, fixed_abs, tag = 'smem constant byte address 0x4 - core index']
  #allocation1 [shape = 'u32[144,128]{1,0:T(1,128)}', space=vmem, size = 0x12000, scoped, tag = 'internal scratch']
  %s0 = inlined_call_operand.vmem [shape: f32[16,128], index: 0, kind: input, shape index: {}]
  %s1 = inlined_call_operand.vmem [shape: f32[128,4], index: 1, kind: input, shape index: {}]
  %s2 = inlined_call_operand.vmem [shape: f32[4,128], index: 2, kind: input, shape index: {}]
  %s3 = inlined_call_operand.vmem [shape: f32[4,128], index: 3, kind: input, shape index: {}]
  %s4 = inlined_call_operand.hbm [shape: f32[16,128], index: 4, kind: output, shape index: {}]
  %s5 = sld [smem:[#allocation0]]
  $region49: #{tpu_custom_call.1} parent=0
    _
  %s7 = ssub.s32 1, %s5
  %s8 = scalar_select 0, %s7, %s5
  $region1: #{tpu_custom_call.1} parent=0
    #allocation2 [shape = 'u8[8192]{0}', space=vmem, size = 0x2000, scoped, tag = 'output window, operand 0']
    #allocation3 [shape = 's32[2]{0}', space=sflag, size = 0x8, scoped, tag = 'scoped memory for tpu_custom_call.1']
    %9 = vsyncpa [#allocation3], 0
    %s10 = scalar_lea.sflag [#allocation3], 1
    %11 = vsyncpa %s10, 0
    loop: start=0, step=1, limit=4
    $region2: #{tpu_custom_call.1} parent=1 // loop_pre_header
      _
    $region3: #{tpu_custom_call.1} parent=1 // loop_header
      %s13 = sphi 0, %s17
      %p14 = scmp.ge.s32.totalorder %s13, 4
      %s23 = sphi 0, %s25
      %s26 = sphi 0, %s23
      %s27 = sphi 0, %s26
      %s43 = sphi 0, %s27
      %s47 = sphi 0, %s47
      %s49 = sphi 0, %s47
      %s50 = sphi 0, %s49
      %s64 = sphi 0, %s50
      %s68 = sphi 0, %s68
      %s70 = sphi 0, %s68
      %s71 = sphi 0, %s70
      %s85 = sphi 0, %s71
      %s89 = sphi 0, %s89
      %s91 = sphi 0, %s89
      %s92 = sphi 0, %s91
      %s106 = sphi 0, %s92
      %s112 = sphi 0, %s114
      %s115 = sphi 0, %s112
      %s116 = sphi 0, %s115
      %s132 = sphi 0, %s116
    $region4: #{tpu_custom_call.1} parent=1 // loop_header_branch
      %16 = sbr.rel (%p14) target = $region8
    $region5: #{tpu_custom_call.1} parent=1 // loop_body
      %s18 = ssub.s32 %s13, 1
      %s19 = ssub.s32 %s13, 2
      %s20 = sadd.s32 %s13, 1
      %s21 = ssub.s32 %s13, %s20
      %p22 = scmp.eq.s32.totalorder %s21, 0
      %s24 = sadd.s32 %s23, 1
      %s25 = scalar_select %p22, %s23, %s24
      %p28 = pneg %p22
      %p29 = scmp.eq.s32.totalorder %s13, 1
      %p30 = por %p28, %p29
      %p31 = scmp.ne.s32.totalorder %s23, %s26
      %p32 = scmp.eq.s32.totalorder %s13, 0
      %p33 = por %p31, %p32
      %p34 = scmp.ne.s32.totalorder %s23, %s26
      %p35 = scmp.eq.s32.totalorder %s18, 1
      %p36 = por %p34, %p35
      %p37 = scmp.ne.s32.totalorder %s26, %s27
      %p38 = scmp.eq.s32.totalorder %s18, 0
      %p39 = por %p37, %p38
      %p40 = scmp.ne.s32.totalorder %s26, %s27
      %p41 = scmp.eq.s32.totalorder %s19, 1
      %p42 = por %p40, %p41
      %p44 = scmp.ne.s32.totalorder %s27, %s43
      %p45 = scmp.eq.s32.totalorder %s19, 0
      %p46 = por %p44, %p45
      %s48 = sadd.s32 %s47, 1
      %p51 = scmp.eq.s32.totalorder %s13, 1
      %p52 = scmp.ne.s32.totalorder %s47, %s49
      %p53 = scmp.eq.s32.totalorder %s13, 0
      %p54 = por %p52, %p53
      %p55 = scmp.ne.s32.totalorder %s47, %s49
      %p56 = scmp.eq.s32.totalorder %s18, 1
      %p57 = por %p55, %p56
      %p58 = scmp.ne.s32.totalorder %s49, %s50
      %p59 = scmp.eq.s32.totalorder %s18, 0
      %p60 = por %p58, %p59
      %p61 = scmp.ne.s32.totalorder %s49, %s50
      %p62 = scmp.eq.s32.totalorder %s19, 1
      %p63 = por %p61, %p62
      %p65 = scmp.ne.s32.totalorder %s50, %s64
      %p66 = scmp.eq.s32.totalorder %s19, 0
      %p67 = por %p65, %p66
      %s69 = sadd.s32 %s68, 1
      %p72 = scmp.eq.s32.totalorder %s13, 1
      %p73 = scmp.ne.s32.totalorder %s68, %s70
      %p74 = scmp.eq.s32.totalorder %s13, 0
      %p75 = por %p73, %p74
      %p76 = scmp.ne.s32.totalorder %s68, %s70
      %p77 = scmp.eq.s32.totalorder %s18, 1
      %p78 = por %p76, %p77
      %p79 = scmp.ne.s32.totalorder %s70, %s71
      %p80 = scmp.eq.s32.totalorder %s18, 0
      %p81 = por %p79, %p80
      %p82 = scmp.ne.s32.totalorder %s70, %s71
      %p83 = scmp.eq.s32.totalorder %s19, 1
      %p84 = por %p82, %p83
      %p86 = scmp.ne.s32.totalorder %s71, %s85
      %p87 = scmp.eq.s32.totalorder %s19, 0
      %p88 = por %p86, %p87
      %s90 = sadd.s32 %s89, 1
      %p93 = scmp.eq.s32.totalorder %s13, 1
      %p94 = scmp.ne.s32.totalorder %s89, %s91
      %p95 = scmp.eq.s32.totalorder %s13, 0
      %p96 = por %p94, %p95
      %p97 = scmp.ne.s32.totalorder %s89, %s91
      %p98 = scmp.eq.s32.totalorder %s18, 1
      %p99 = por %p97, %p98
      %p100 = scmp.ne.s32.totalorder %s91, %s92
      %p101 = scmp.eq.s32.totalorder %s18, 0
      %p102 = por %p100, %p101
      %p103 = scmp.ne.s32.totalorder %s91, %s92
      %p104 = scmp.eq.s32.totalorder %s19, 1
      %p105 = por %p103, %p104
      %p107 = scmp.ne.s32.totalorder %s92, %s106
      %p108 = scmp.eq.s32.totalorder %s19, 0
      %p109 = por %p107, %p108
      %s110 = ssub.s32 %s13, %s20
      %p111 = scmp.eq.s32.totalorder %s110, 0
      %s113 = sadd.s32 %s112, 1
      %s114 = scalar_select %p111, %s112, %s113
      %p117 = pneg %p111
      %p118 = scmp.eq.s32.totalorder %s13, 1
      %p119 = por %p117, %p118
      %p120 = scmp.ne.s32.totalorder %s112, %s115
      %p121 = scmp.eq.s32.totalorder %s13, 0
      %p122 = por %p120, %p121
      %p123 = scmp.ne.s32.totalorder %s112, %s115
      %p124 = scmp.eq.s32.totalorder %s18, 1
      %p125 = por %p123, %p124
      %p126 = scmp.ne.s32.totalorder %s115, %s116
      %p127 = scmp.eq.s32.totalorder %s18, 0
      %p128 = por %p126, %p127
      %p129 = scmp.ne.s32.totalorder %s115, %s116
      %p130 = scmp.eq.s32.totalorder %s19, 1
      %p131 = por %p129, %p130
      %p133 = scmp.ne.s32.totalorder %s116, %s132
      %p134 = scmp.eq.s32.totalorder %s19, 0
      %p135 = por %p133, %p134
      %p136 = scmp.le.s32.totalorder 1, %s13
      %p137 = scmp.lt.s32.totalorder %s13, 3
      %p138 = pnand %p136, %p137
      %p139 = pneg %p138
      // Predicated region
      $region9: #{tpu_custom_call.1} parent=5 // pred_check
        _
      $region10: #{tpu_custom_call.1} parent=5 // pred_check_branch
        %141 = sbr.rel (%p138) target = $region12
      $region11: #{tpu_custom_call.1} parent=5 // pred_region
        %s142 = ssub.s32 %s13, 1
        // Predicated region
        $region13: #{tpu_custom_call.1} parent=11 // pred_check
          %p143 = pneg %p60
        $region14: #{tpu_custom_call.1} parent=11 // pred_check_branch
          %145 = sbr.rel (%p143) target = $region16
        $region15: #{tpu_custom_call.1} parent=11 // pred_region
          _
        $region16: #{tpu_custom_call.1} parent=11 // pred_fallthru
          _
        // Predicated region
        $region17: #{tpu_custom_call.1} parent=11 // pred_check
          %p146 = pneg %p81
        $region18: #{tpu_custom_call.1} parent=11 // pred_check_branch
          %148 = sbr.rel (%p146) target = $region20
        $region19: #{tpu_custom_call.1} parent=11 // pred_region
          _
        $region20: #{tpu_custom_call.1} parent=11 // pred_fallthru
          _
        // Predicated region
        $region21: #{tpu_custom_call.1} parent=11 // pred_check
          %p149 = pneg %p102
        $region22: #{tpu_custom_call.1} parent=11 // pred_check_branch
          %151 = sbr.rel (%p149) target = $region24
        $region23: #{tpu_custom_call.1} parent=11 // pred_region
          _
        $region24: #{tpu_custom_call.1} parent=11 // pred_fallthru
          _
      $region12: #{tpu_custom_call.1} parent=5 // pred_fallthru
        _
      %p152 = scmp.lt.s32.totalorder %s13, 2
      // Predicated region
      $region25: #{tpu_custom_call.1} parent=5 // pred_check
        %p153 = pneg %p152
      $region26: #{tpu_custom_call.1} parent=5 // pred_check_branch
        %155 = sbr.rel (%p153) target = $region28
      $region27: #{tpu_custom_call.1} parent=5 // pred_region
        // Predicated region
        $region29: #{tpu_custom_call.1} parent=27 // pred_check
          %p156 = pneg %p33
        $region30: #{tpu_custom_call.1} parent=27 // pred_check_branch
          %158 = sbr.rel (%p156) target = $region32
        $region31: #{tpu_custom_call.1} parent=27 // pred_region
          %p159 = scmp.lt.s32.totalorder %s13, 1
          %s160 = scalar_select %p159, %s13, 1
          %s161 = smul.addr %s160, 8
          %s162 = scalar_lea.vmem %s0, %s161
        $region32: #{tpu_custom_call.1} parent=27 // pred_fallthru
          _
      $region28: #{tpu_custom_call.1} parent=5 // pred_fallthru
        _
      %p163 = scmp.le.s32.totalorder 1, %s13
      %p164 = scmp.lt.s32.totalorder %s13, 3
      %p165 = pnand %p163, %p164
      %p166 = pneg %p165
      // Predicated region
      $region33: #{tpu_custom_call.1} parent=5 // pred_check
        _
      $region34: #{tpu_custom_call.1} parent=5 // pred_check_branch
        %168 = sbr.rel (%p165) target = $region36
      $region35: #{tpu_custom_call.1} parent=5 // pred_region
        %s169 = ssub.s32 %s13, 1
        %p170 = scmp.lt.s32.totalorder %s18, 1
        %s171 = scalar_select %p170, %s18, 1
        %s172 = smul.addr %s171, 8
        %s173 = scalar_lea.vmem %s0, %s172
        %p174 = pneg %p39
        %p175 = pneg %p36
        %p176 = pneg %p60
        %p177 = pneg %p57
        %p178 = pneg %p81
        %p179 = pneg %p78
        %p180 = pneg %p102
        %p181 = pneg %p99
        %p182 = pneg %p128
        %p183 = pneg %p125
        %s184 = sand.u32 %s115, 1
        %s185 = scalar_lea.sflag [#allocation3], %s184
        %s186 = sand.u32 %s115, 1
        %s187 = smul.addr %s186, 8
        %s188 = scalar_lea.vmem [#allocation2], %s187
        %p189 = scmp.lt.s32.totalorder %s18, 1
        %s190 = scalar_select %p189, %s18, 1
        %s191 = smul.addr %s190, 8
        %s192 = scalar_lea.vmem %s0, %s191
        %v193 = vld [vmem:[%s192] sm:$0xff]
        %v194 = vld [vmem:[%s1] sm:$0xff]
        %v195 = vld [vmem:[%s1 + $0x8] sm:$0xff]
        %v196 = vld [vmem:[%s1 + $0x10] sm:$0xff]
        %v197 = vld [vmem:[%s1 + $0x18] sm:$0xff]
        %v198 = vld [vmem:[%s1 + $0x20] sm:$0xff]
        %v199 = vld [vmem:[%s1 + $0x28] sm:$0xff]
        %v200 = vld [vmem:[%s1 + $0x30] sm:$0xff]
        %v201 = vld [vmem:[%s1 + $0x38] sm:$0xff]
        %v202 = vld [vmem:[%s1 + $0x40] sm:$0xff]
        %v203 = vld [vmem:[%s1 + $0x48] sm:$0xff]
        %v204 = vld [vmem:[%s1 + $0x50] sm:$0xff]
        %v205 = vld [vmem:[%s1 + $0x58] sm:$0xff]
        %v206 = vld [vmem:[%s1 + $0x60] sm:$0xff]
        %v207 = vld [vmem:[%s1 + $0x68] sm:$0xff]
        %v208 = vld [vmem:[%s1 + $0x70] sm:$0xff]
        %v209 = vld [vmem:[%s1 + $0x78] sm:$0xff]
        %210 = vmatprep.subr.mxu0 0.0
        %v211 = vand.u32 %v194, 4294901760
        %212 = vmatpush1.msra.mxu0 %v211
        %213 = vmatprep.subr.mxu0 0.0
        %v214 = vand.u32 %v195, 4294901760
        %215 = vmatpush1.msra.mxu0 %v214
        %216 = vmatprep.subr.mxu0 0.0
        %v217 = vand.u32 %v196, 4294901760
        %218 = vmatpush1.msra.mxu0 %v217
        %219 = vmatprep.subr.mxu0 0.0
        %v220 = vand.u32 %v197, 4294901760
        %221 = vmatpush1.msra.mxu0 %v220
        %222 = vmatprep.subr.mxu0 0.0
        %v223 = vand.u32 %v198, 4294901760
        %224 = vmatpush1.msra.mxu0 %v223
        %225 = vmatprep.subr.mxu0 0.0
        %v226 = vand.u32 %v199, 4294901760
        %227 = vmatpush1.msra.mxu0 %v226
        %228 = vmatprep.subr.mxu0 0.0
        %v229 = vand.u32 %v200, 4294901760
        %230 = vmatpush1.msra.mxu0 %v229
        %231 = vmatprep.subr.mxu0 0.0
        %v232 = vand.u32 %v201, 4294901760
        %233 = vmatpush1.msra.mxu0 %v232
        %234 = vmatprep.subr.mxu0 0.0
        %v235 = vand.u32 %v202, 4294901760
        %236 = vmatpush1.msra.mxu0 %v235
        %237 = vmatprep.subr.mxu0 0.0
        %v238 = vand.u32 %v203, 4294901760
        %239 = vmatpush1.msra.mxu0 %v238
        %240 = vmatprep.subr.mxu0 0.0
        %v241 = vand.u32 %v204, 4294901760
        %242 = vmatpush1.msra.mxu0 %v241
        %243 = vmatprep.subr.mxu0 0.0
        %v244 = vand.u32 %v205, 4294901760
        %245 = vmatpush1.msra.mxu0 %v244
        %246 = vmatprep.subr.mxu0 0.0
        %v247 = vand.u32 %v206, 4294901760
        %248 = vmatpush1.msra.mxu0 %v247
        %249 = vmatprep.subr.mxu0 0.0
        %v250 = vand.u32 %v207, 4294901760
        %251 = vmatpush1.msra.mxu0 %v250
        %252 = vmatprep.subr.mxu0 0.0
        %v253 = vand.u32 %v208, 4294901760
        %254 = vmatpush1.msra.mxu0 %v253
        %255 = vmatprep.subr.mxu0 0.0
        %v256 = vand.u32 %v209, 4294901760
        %257 = vmatpush1.msra.mxu0 %v256
        %258 = vmatprep.subr.mxu0 0.0
        %259 = vmatpush1.msra.mxu0 0.0
        %260 = vmatprep.subr.mxu0 0.0
        %261 = vmatpush1.msra.mxu0 0.0
        %262 = vmatprep.subr.mxu0 0.0
        %263 = vmatpush1.msra.mxu0 0.0
        %264 = vmatprep.subr.mxu0 0.0
        %265 = vmatpush1.msra.mxu0 0.0
        %266 = vmatprep.subr.mxu0 0.0
        %267 = vmatpush1.msra.mxu0 0.0
        %268 = vmatprep.subr.mxu0 0.0
        %269 = vmatpush1.msra.mxu0 0.0
        %270 = vmatprep.subr.mxu0 0.0
        %271 = vmatpush1.msra.mxu0 0.0
        %272 = vmatprep.subr.mxu0 0.0
        %273 = vmatpush1.msra.mxu0 0.0
        %274 = vmatprep.subr.mxu0 0.0
        %275 = vmatpush1.msra.mxu0 0.0
        %276 = vmatprep.subr.mxu0 0.0
        %277 = vmatpush1.msra.mxu0 0.0
        %278 = vmatprep.subr.mxu0 0.0
        %279 = vmatpush1.msra.mxu0 0.0
        %280 = vmatprep.subr.mxu0 0.0
        %281 = vmatpush1.msra.mxu0 0.0
        %282 = vmatprep.subr.mxu0 0.0
        %283 = vmatpush1.msra.mxu0 0.0
        %284 = vmatprep.subr.mxu0 0.0
        %285 = vmatpush1.msra.mxu0 0.0
        %286 = vmatprep.subr.mxu0 0.0
        %287 = vmatpush1.msra.mxu0 0.0
        %288 = vmatprep.subr.mxu0 0.0
        %289 = vmatpush1.msra.mxu0 0.0
        %290 = vmatprep.mubr.f32.mxu0 0.0
        %v291 = vand.u32 %v193, 4294901760
        %v292 = vsub.f32 %v193, %v291
        %v293 = vand.u32 %v292, 4294901760
        %v294 = vsub.f32 %v292, %v293
        %v295 = vand.u32 %v294, 4294901760
        %296 = vmatmul.mubr.f32.gmra.mrb[0].mxu0 %v295
        %v297 = vpop.f32.mrb[0].mxu0
        %v298 = vadd.f32 0.0, %v297
        %v299 = vpop.f32.mrb[0].mxu0
        %300 = vdwg.mxu0
        %301 = vmatprep.subr.mxu0 0.0
        %v302 = vand.u32 %v194, 4294901760
        %v303 = vsub.f32 %v194, %v302
        %v304 = vand.u32 %v303, 4294901760
        %v305 = vsub.f32 %v303, %v304
        %v306 = vand.u32 %v305, 4294901760
        %307 = vmatpush1.msra.mxu0 %v306
        %308 = vmatprep.subr.mxu0 0.0
        %v309 = vand.u32 %v195, 4294901760
        %v310 = vsub.f32 %v195, %v309
        %v311 = vand.u32 %v310, 4294901760
        %v312 = vsub.f32 %v310, %v311
        %v313 = vand.u32 %v312, 4294901760
        %314 = vmatpush1.msra.mxu0 %v313
        %315 = vmatprep.subr.mxu0 0.0
        %v316 = vand.u32 %v196, 4294901760
        %v317 = vsub.f32 %v196, %v316
        %v318 = vand.u32 %v317, 4294901760
        %v319 = vsub.f32 %v317, %v318
        %v320 = vand.u32 %v319, 4294901760
        %321 = vmatpush1.msra.mxu0 %v320
        %322 = vmatprep.subr.mxu0 0.0
        %v323 = vand.u32 %v197, 4294901760
        %v324 = vsub.f32 %v197, %v323
        %v325 = vand.u32 %v324, 4294901760
        %v326 = vsub.f32 %v324, %v325
        %v327 = vand.u32 %v326, 4294901760
        %328 = vmatpush1.msra.mxu0 %v327
        %329 = vmatprep.subr.mxu0 0.0
        %v330 = vand.u32 %v198, 4294901760
        %v331 = vsub.f32 %v198, %v330
        %v332 = vand.u32 %v331, 4294901760
        %v333 = vsub.f32 %v331, %v332
        %v334 = vand.u32 %v333, 4294901760
        %335 = vmatpush1.msra.mxu0 %v334
        %336 = vmatprep.subr.mxu0 0.0
        %v337 = vand.u32 %v199, 4294901760
        %v338 = vsub.f32 %v199, %v337
        %v339 = vand.u32 %v338, 4294901760
        %v340 = vsub.f32 %v338, %v339
        %v341 = vand.u32 %v340, 4294901760
        %342 = vmatpush1.msra.mxu0 %v341
        %343 = vmatprep.subr.mxu0 0.0
        %v344 = vand.u32 %v200, 4294901760
        %v345 = vsub.f32 %v200, %v344
        %v346 = vand.u32 %v345, 4294901760
        %v347 = vsub.f32 %v345, %v346
        %v348 = vand.u32 %v347, 4294901760
        %349 = vmatpush1.msra.mxu0 %v348
        %350 = vmatprep.subr.mxu0 0.0
        %v351 = vand.u32 %v201, 4294901760
        %v352 = vsub.f32 %v201, %v351
        %v353 = vand.u32 %v352, 4294901760
        %v354 = vsub.f32 %v352, %v353
        %v355 = vand.u32 %v354, 4294901760
        %356 = vmatpush1.msra.mxu0 %v355
        %357 = vmatprep.subr.mxu0 0.0
        %v358 = vand.u32 %v202, 4294901760
        %v359 = vsub.f32 %v202, %v358
        %v360 = vand.u32 %v359, 4294901760
        %v361 = vsub.f32 %v359, %v360
        %v362 = vand.u32 %v361, 4294901760
        %363 = vmatpush1.msra.mxu0 %v362
        %364 = vmatprep.subr.mxu0 0.0
        %v365 = vand.u32 %v203, 4294901760
        %v366 = vsub.f32 %v203, %v365
        %v367 = vand.u32 %v366, 4294901760
        %v368 = vsub.f32 %v366, %v367
        %v369 = vand.u32 %v368, 4294901760
        %370 = vmatpush1.msra.mxu0 %v369
        %371 = vmatprep.subr.mxu0 0.0
        %v372 = vand.u32 %v204, 4294901760
        %v373 = vsub.f32 %v204, %v372
        %v374 = vand.u32 %v373, 4294901760
        %v375 = vsub.f32 %v373, %v374
        %v376 = vand.u32 %v375, 4294901760
        %377 = vmatpush1.msra.mxu0 %v376
        %378 = vmatprep.subr.mxu0 0.0
        %v379 = vand.u32 %v205, 4294901760
        %v380 = vsub.f32 %v205, %v379
        %v381 = vand.u32 %v380, 4294901760
        %v382 = vsub.f32 %v380, %v381
        %v383 = vand.u32 %v382, 4294901760
        %384 = vmatpush1.msra.mxu0 %v383
        %385 = vmatprep.subr.mxu0 0.0
        %v386 = vand.u32 %v206, 4294901760
        %v387 = vsub.f32 %v206, %v386
        %v388 = vand.u32 %v387, 4294901760
        %v389 = vsub.f32 %v387, %v388
        %v390 = vand.u32 %v389, 4294901760
        %391 = vmatpush1.msra.mxu0 %v390
        %392 = vmatprep.subr.mxu0 0.0
        %v393 = vand.u32 %v207, 4294901760
        %v394 = vsub.f32 %v207, %v393
        %v395 = vand.u32 %v394, 4294901760
        %v396 = vsub.f32 %v394, %v395
        %v397 = vand.u32 %v396, 4294901760
        %398 = vmatpush1.msra.mxu0 %v397
        %399 = vmatprep.subr.mxu0 0.0
        %v400 = vand.u32 %v208, 4294901760
        %v401 = vsub.f32 %v208, %v400
        %v402 = vand.u32 %v401, 4294901760
        %v403 = vsub.f32 %v401, %v402
        %v404 = vand.u32 %v403, 4294901760
        %405 = vmatpush1.msra.mxu0 %v404
        %406 = vmatprep.subr.mxu0 0.0
        %v407 = vand.u32 %v209, 4294901760
        %v408 = vsub.f32 %v209, %v407
        %v409 = vand.u32 %v408, 4294901760
        %v410 = vsub.f32 %v408, %v409
        %v411 = vand.u32 %v410, 4294901760
        %412 = vmatpush1.msra.mxu0 %v411
        %413 = vmatprep.subr.mxu0 0.0
        %414 = vmatpush1.msra.mxu0 0.0
        %415 = vmatprep.subr.mxu0 0.0
        %416 = vmatpush1.msra.mxu0 0.0
        %417 = vmatprep.subr.mxu0 0.0
        %418 = vmatpush1.msra.mxu0 0.0
        %419 = vmatprep.subr.mxu0 0.0
        %420 = vmatpush1.msra.mxu0 0.0
        %421 = vmatprep.subr.mxu0 0.0
        %422 = vmatpush1.msra.mxu0 0.0
        %423 = vmatprep.subr.mxu0 0.0
        %424 = vmatpush1.msra.mxu0 0.0
        %425 = vmatprep.subr.mxu0 0.0
        %426 = vmatpush1.msra.mxu0 0.0
        %427 = vmatprep.subr.mxu0 0.0
        %428 = vmatpush1.msra.mxu0 0.0
        %429 = vmatprep.subr.mxu0 0.0
        %430 = vmatpush1.msra.mxu0 0.0
        %431 = vmatprep.subr.mxu0 0.0
        %432 = vmatpush1.msra.mxu0 0.0
        %433 = vmatprep.subr.mxu0 0.0
        %434 = vmatpush1.msra.mxu0 0.0
        %435 = vmatprep.subr.mxu0 0.0
        %436 = vmatpush1.msra.mxu0 0.0
        %437 = vmatprep.subr.mxu0 0.0
        %438 = vmatpush1.msra.mxu0 0.0
        %439 = vmatprep.subr.mxu0 0.0
        %440 = vmatpush1.msra.mxu0 0.0
        %441 = vmatprep.subr.mxu0 0.0
        %442 = vmatpush1.msra.mxu0 0.0
        %443 = vmatprep.subr.mxu0 0.0
        %444 = vmatpush1.msra.mxu0 0.0
        %445 = vmatprep.mubr.f32.mxu0 0.0
        %v446 = vand.u32 %v193, 4294901760
        %447 = vmatmul.mubr.f32.gmra.mrb[0].mxu0 %v446
        %v448 = vpop.f32.mrb[0].mxu0
        %v449 = vadd.f32 %v298, %v448
        %v450 = vpop.f32.mrb[0].mxu0
        %451 = vdwg.mxu0
        %452 = vmatprep.subr.mxu0 0.0
        %v453 = vand.u32 %v194, 4294901760
        %v454 = vsub.f32 %v194, %v453
        %455 = vmatpush1.msra.mxu0 %v454
        %456 = vmatprep.subr.mxu0 0.0
        %v457 = vand.u32 %v195, 4294901760
        %v458 = vsub.f32 %v195, %v457
        %459 = vmatpush1.msra.mxu0 %v458
        %460 = vmatprep.subr.mxu0 0.0
        %v461 = vand.u32 %v196, 4294901760
        %v462 = vsub.f32 %v196, %v461
        %463 = vmatpush1.msra.mxu0 %v462
        %464 = vmatprep.subr.mxu0 0.0
        %v465 = vand.u32 %v197, 4294901760
        %v466 = vsub.f32 %v197, %v465
        %467 = vmatpush1.msra.mxu0 %v466
        %468 = vmatprep.subr.mxu0 0.0
        %v469 = vand.u32 %v198, 4294901760
        %v470 = vsub.f32 %v198, %v469
        %471 = vmatpush1.msra.mxu0 %v470
        %472 = vmatprep.subr.mxu0 0.0
        %v473 = vand.u32 %v199, 4294901760
        %v474 = vsub.f32 %v199, %v473
        %475 = vmatpush1.msra.mxu0 %v474
        %476 = vmatprep.subr.mxu0 0.0
        %v477 = vand.u32 %v200, 4294901760
        %v478 = vsub.f32 %v200, %v477
        %479 = vmatpush1.msra.mxu0 %v478
        %480 = vmatprep.subr.mxu0 0.0
        %v481 = vand.u32 %v201, 4294901760
        %v482 = vsub.f32 %v201, %v481
        %483 = vmatpush1.msra.mxu0 %v482
        %484 = vmatprep.subr.mxu0 0.0
        %v485 = vand.u32 %v202, 4294901760
        %v486 = vsub.f32 %v202, %v485
        %487 = vmatpush1.msra.mxu0 %v486
        %488 = vmatprep.subr.mxu0 0.0
        %v489 = vand.u32 %v203, 4294901760
        %v490 = vsub.f32 %v203, %v489
        %491 = vmatpush1.msra.mxu0 %v490
        %492 = vmatprep.subr.mxu0 0.0
        %v493 = vand.u32 %v204, 4294901760
        %v494 = vsub.f32 %v204, %v493
        %495 = vmatpush1.msra.mxu0 %v494
        %496 = vmatprep.subr.mxu0 0.0
        %v497 = vand.u32 %v205, 4294901760
        %v498 = vsub.f32 %v205, %v497
        %499 = vmatpush1.msra.mxu0 %v498
        %500 = vmatprep.subr.mxu0 0.0
        %v501 = vand.u32 %v206, 4294901760
        %v502 = vsub.f32 %v206, %v501
        %503 = vmatpush1.msra.mxu0 %v502
        %504 = vmatprep.subr.mxu0 0.0
        %v505 = vand.u32 %v207, 4294901760
        %v506 = vsub.f32 %v207, %v505
        %507 = vmatpush1.msra.mxu0 %v506
        %508 = vmatprep.subr.mxu0 0.0
        %v509 = vand.u32 %v208, 4294901760
        %v510 = vsub.f32 %v208, %v509
        %511 = vmatpush1.msra.mxu0 %v510
        %512 = vmatprep.subr.mxu0 0.0
        %v513 = vand.u32 %v209, 4294901760
        %v514 = vsub.f32 %v209, %v513
        %515 = vmatpush1.msra.mxu0 %v514
        %516 = vmatprep.subr.mxu0 0.0
        %517 = vmatpush1.msra.mxu0 0.0
        %518 = vmatprep.subr.mxu0 0.0
        %519 = vmatpush1.msra.mxu0 0.0
        %520 = vmatprep.subr.mxu0 0.0
        %521 = vmatpush1.msra.mxu0 0.0
        %522 = vmatprep.subr.mxu0 0.0
        %523 = vmatpush1.msra.mxu0 0.0
        %524 = vmatprep.subr.mxu0 0.0
        %525 = vmatpush1.msra.mxu0 0.0
        %526 = vmatprep.subr.mxu0 0.0
        %527 = vmatpush1.msra.mxu0 0.0
        %528 = vmatprep.subr.mxu0 0.0
        %529 = vmatpush1.msra.mxu0 0.0
        %530 = vmatprep.subr.mxu0 0.0
        %531 = vmatpush1.msra.mxu0 0.0
        %532 = vmatprep.subr.mxu0 0.0
        %533 = vmatpush1.msra.mxu0 0.0
        %534 = vmatprep.subr.mxu0 0.0
        %535 = vmatpush1.msra.mxu0 0.0
        %536 = vmatprep.subr.mxu0 0.0
        %537 = vmatpush1.msra.mxu0 0.0
        %538 = vmatprep.subr.mxu0 0.0
        %539 = vmatpush1.msra.mxu0 0.0
        %540 = vmatprep.subr.mxu0 0.0
        %541 = vmatpush1.msra.mxu0 0.0
        %542 = vmatprep.subr.mxu0 0.0
        %543 = vmatpush1.msra.mxu0 0.0
        %544 = vmatprep.subr.mxu0 0.0
        %545 = vmatpush1.msra.mxu0 0.0
        %546 = vmatprep.subr.mxu0 0.0
        %547 = vmatpush1.msra.mxu0 0.0
        %548 = vmatprep.mubr.f32.mxu0 0.0
        %v549 = vand.u32 %v193, 4294901760
        %v550 = vsub.f32 %v193, %v549
        %551 = vmatmul.mubr.f32.gmra.mrb[0].mxu0 %v550
        %v552 = vpop.f32.mrb[0].mxu0
        %v553 = vadd.f32 %v449, %v552
        %v554 = vpop.f32.mrb[0].mxu0
        %555 = vdwg.mxu0
        %556 = vmatprep.subr.mxu0 0.0
        %v557 = vand.u32 %v194, 4294901760
        %558 = vmatpush1.msra.mxu0 %v557
        %559 = vmatprep.subr.mxu0 0.0
        %v560 = vand.u32 %v195, 4294901760
        %561 = vmatpush1.msra.mxu0 %v560
        %562 = vmatprep.subr.mxu0 0.0
        %v563 = vand.u32 %v196, 4294901760
        %564 = vmatpush1.msra.mxu0 %v563
        %565 = vmatprep.subr.mxu0 0.0
        %v566 = vand.u32 %v197, 4294901760
        %567 = vmatpush1.msra.mxu0 %v566
        %568 = vmatprep.subr.mxu0 0.0
        %v569 = vand.u32 %v198, 4294901760
        %570 = vmatpush1.msra.mxu0 %v569
        %571 = vmatprep.subr.mxu0 0.0
        %v572 = vand.u32 %v199, 4294901760
        %573 = vmatpush1.msra.mxu0 %v572
        %574 = vmatprep.subr.mxu0 0.0
        %v575 = vand.u32 %v200, 4294901760
        %576 = vmatpush1.msra.mxu0 %v575
        %577 = vmatprep.subr.mxu0 0.0
        %v578 = vand.u32 %v201, 4294901760
        %579 = vmatpush1.msra.mxu0 %v578
        %580 = vmatprep.subr.mxu0 0.0
        %v581 = vand.u32 %v202, 4294901760
        %582 = vmatpush1.msra.mxu0 %v581
        %583 = vmatprep.subr.mxu0 0.0
        %v584 = vand.u32 %v203, 4294901760
        %585 = vmatpush1.msra.mxu0 %v584
        %586 = vmatprep.subr.mxu0 0.0
        %v587 = vand.u32 %v204, 4294901760
        %588 = vmatpush1.msra.mxu0 %v587
        %589 = vmatprep.subr.mxu0 0.0
        %v590 = vand.u32 %v205, 4294901760
        %591 = vmatpush1.msra.mxu0 %v590
        %592 = vmatprep.subr.mxu0 0.0
        %v593 = vand.u32 %v206, 4294901760
        %594 = vmatpush1.msra.mxu0 %v593
        %595 = vmatprep.subr.mxu0 0.0
        %v596 = vand.u32 %v207, 4294901760
        %597 = vmatpush1.msra.mxu0 %v596
        %598 = vmatprep.subr.mxu0 0.0
        %v599 = vand.u32 %v208, 4294901760
        %600 = vmatpush1.msra.mxu0 %v599
        %601 = vmatprep.subr.mxu0 0.0
        %v602 = vand.u32 %v209, 4294901760
        %603 = vmatpush1.msra.mxu0 %v602
        %604 = vmatprep.subr.mxu0 0.0
        %605 = vmatpush1.msra.mxu0 0.0
        %606 = vmatprep.subr.mxu0 0.0
        %607 = vmatpush1.msra.mxu0 0.0
        %608 = vmatprep.subr.mxu0 0.0
        %609 = vmatpush1.msra.mxu0 0.0
        %610 = vmatprep.subr.mxu0 0.0
        %611 = vmatpush1.msra.mxu0 0.0
        %612 = vmatprep.subr.mxu0 0.0
        %613 = vmatpush1.msra.mxu0 0.0
        %614 = vmatprep.subr.mxu0 0.0
        %615 = vmatpush1.msra.mxu0 0.0
        %616 = vmatprep.subr.mxu0 0.0
        %617 = vmatpush1.msra.mxu0 0.0
        %618 = vmatprep.subr.mxu0 0.0
        %619 = vmatpush1.msra.mxu0 0.0
        %620 = vmatprep.subr.mxu0 0.0
        %621 = vmatpush1.msra.mxu0 0.0
        %622 = vmatprep.subr.mxu0 0.0
        %623 = vmatpush1.msra.mxu0 0.0
        %624 = vmatprep.subr.mxu0 0.0
        %625 = vmatpush1.msra.mxu0 0.0
        %626 = vmatprep.subr.mxu0 0.0
        %627 = vmatpush1.msra.mxu0 0.0
        %628 = vmatprep.subr.mxu0 0.0
        %629 = vmatpush1.msra.mxu0 0.0
        %630 = vmatprep.subr.mxu0 0.0
        %631 = vmatpush1.msra.mxu0 0.0
        %632 = vmatprep.subr.mxu0 0.0
        %633 = vmatpush1.msra.mxu0 0.0
        %634 = vmatprep.subr.mxu0 0.0
        %635 = vmatpush1.msra.mxu0 0.0
        %636 = vmatprep.mubr.f32.mxu0 0.0
        %v637 = vand.u32 %v193, 4294901760
        %v638 = vsub.f32 %v193, %v637
        %v639 = vand.u32 %v638, 4294901760
        %640 = vmatmul.mubr.f32.gmra.mrb[0].mxu0 %v639
        %v641 = vpop.f32.mrb[0].mxu0
        %v642 = vadd.f32 %v553, %v641
        %v643 = vpop.f32.mrb[0].mxu0
        %644 = vdwg.mxu0
        %645 = vmatprep.subr.mxu0 0.0
        %v646 = vand.u32 %v194, 4294901760
        %v647 = vsub.f32 %v194, %v646
        %v648 = vand.u32 %v647, 4294901760
        %649 = vmatpush1.msra.mxu0 %v648
        %650 = vmatprep.subr.mxu0 0.0
        %v651 = vand.u32 %v195, 4294901760
        %v652 = vsub.f32 %v195, %v651
        %v653 = vand.u32 %v652, 4294901760
        %654 = vmatpush1.msra.mxu0 %v653
        %655 = vmatprep.subr.mxu0 0.0
        %v656 = vand.u32 %v196, 4294901760
        %v657 = vsub.f32 %v196, %v656
        %v658 = vand.u32 %v657, 4294901760
        %659 = vmatpush1.msra.mxu0 %v658
        %660 = vmatprep.subr.mxu0 0.0
        %v661 = vand.u32 %v197, 4294901760
        %v662 = vsub.f32 %v197, %v661
        %v663 = vand.u32 %v662, 4294901760
        %664 = vmatpush1.msra.mxu0 %v663
        %665 = vmatprep.subr.mxu0 0.0
        %v666 = vand.u32 %v198, 4294901760
        %v667 = vsub.f32 %v198, %v666
        %v668 = vand.u32 %v667, 4294901760
        %669 = vmatpush1.msra.mxu0 %v668
        %670 = vmatprep.subr.mxu0 0.0
        %v671 = vand.u32 %v199, 4294901760
        %v672 = vsub.f32 %v199, %v671
        %v673 = vand.u32 %v672, 4294901760
        %674 = vmatpush1.msra.mxu0 %v673
        %675 = vmatprep.subr.mxu0 0.0
        %v676 = vand.u32 %v200, 4294901760
        %v677 = vsub.f32 %v200, %v676
        %v678 = vand.u32 %v677, 4294901760
        %679 = vmatpush1.msra.mxu0 %v678
        %680 = vmatprep.subr.mxu0 0.0
        %v681 = vand.u32 %v201, 4294901760
        %v682 = vsub.f32 %v201, %v681
        %v683 = vand.u32 %v682, 4294901760
        %684 = vmatpush1.msra.mxu0 %v683
        %685 = vmatprep.subr.mxu0 0.0
        %v686 = vand.u32 %v202, 4294901760
        %v687 = vsub.f32 %v202, %v686
        %v688 = vand.u32 %v687, 4294901760
        %689 = vmatpush1.msra.mxu0 %v688
        %690 = vmatprep.subr.mxu0 0.0
        %v691 = vand.u32 %v203, 4294901760
        %v692 = vsub.f32 %v203, %v691
        %v693 = vand.u32 %v692, 4294901760
        %694 = vmatpush1.msra.mxu0 %v693
        %695 = vmatprep.subr.mxu0 0.0
        %v696 = vand.u32 %v204, 4294901760
        %v697 = vsub.f32 %v204, %v696
        %v698 = vand.u32 %v697, 4294901760
        %699 = vmatpush1.msra.mxu0 %v698
        %700 = vmatprep.subr.mxu0 0.0
        %v701 = vand.u32 %v205, 4294901760
        %v702 = vsub.f32 %v205, %v701
        %v703 = vand.u32 %v702, 4294901760
        %704 = vmatpush1.msra.mxu0 %v703
        %705 = vmatprep.subr.mxu0 0.0
        %v706 = vand.u32 %v206, 4294901760
        %v707 = vsub.f32 %v206, %v706
        %v708 = vand.u32 %v707, 4294901760
        %709 = vmatpush1.msra.mxu0 %v708
        %710 = vmatprep.subr.mxu0 0.0
        %v711 = vand.u32 %v207, 4294901760
        %v712 = vsub.f32 %v207, %v711
        %v713 = vand.u32 %v712, 4294901760
        %714 = vmatpush1.msra.mxu0 %v713
        %715 = vmatprep.subr.mxu0 0.0
        %v716 = vand.u32 %v208, 4294901760
        %v717 = vsub.f32 %v208, %v716
        %v718 = vand.u32 %v717, 4294901760
        %719 = vmatpush1.msra.mxu0 %v718
        %720 = vmatprep.subr.mxu0 0.0
        %v721 = vand.u32 %v209, 4294901760
        %v722 = vsub.f32 %v209, %v721
        %v723 = vand.u32 %v722, 4294901760
        %724 = vmatpush1.msra.mxu0 %v723
        %725 = vmatprep.subr.mxu0 0.0
        %726 = vmatpush1.msra.mxu0 0.0
        %727 = vmatprep.subr.mxu0 0.0
        %728 = vmatpush1.msra.mxu0 0.0
        %729 = vmatprep.subr.mxu0 0.0
        %730 = vmatpush1.msra.mxu0 0.0
        %731 = vmatprep.subr.mxu0 0.0
        %732 = vmatpush1.msra.mxu0 0.0
        %733 = vmatprep.subr.mxu0 0.0
        %734 = vmatpush1.msra.mxu0 0.0
        %735 = vmatprep.subr.mxu0 0.0
        %736 = vmatpush1.msra.mxu0 0.0
        %737 = vmatprep.subr.mxu0 0.0
        %738 = vmatpush1.msra.mxu0 0.0
        %739 = vmatprep.subr.mxu0 0.0
        %740 = vmatpush1.msra.mxu0 0.0
        %741 = vmatprep.subr.mxu0 0.0
        %742 = vmatpush1.msra.mxu0 0.0
        %743 = vmatprep.subr.mxu0 0.0
        %744 = vmatpush1.msra.mxu0 0.0
        %745 = vmatprep.subr.mxu0 0.0
        %746 = vmatpush1.msra.mxu0 0.0
        %747 = vmatprep.subr.mxu0 0.0
        %748 = vmatpush1.msra.mxu0 0.0
        %749 = vmatprep.subr.mxu0 0.0
        %750 = vmatpush1.msra.mxu0 0.0
        %751 = vmatprep.subr.mxu0 0.0
        %752 = vmatpush1.msra.mxu0 0.0
        %753 = vmatprep.subr.mxu0 0.0
        %754 = vmatpush1.msra.mxu0 0.0
        %755 = vmatprep.subr.mxu0 0.0
        %756 = vmatpush1.msra.mxu0 0.0
        %757 = vmatprep.mubr.f32.mxu0 0.0
        %v758 = vand.u32 %v193, 4294901760
        %759 = vmatmul.mubr.f32.gmra.mrb[0].mxu0 %v758
        %v760 = vpop.f32.mrb[0].mxu0
        %v761 = vadd.f32 %v642, %v760
        %v762 = vpop.f32.mrb[0].mxu0
        %763 = vdwg.mxu0
        %764 = vmatprep.subr.mxu0 0.0
        %v765 = vand.u32 %v194, 4294901760
        %766 = vmatpush1.msra.mxu0 %v765
        %767 = vmatprep.subr.mxu0 0.0
        %v768 = vand.u32 %v195, 4294901760
        %769 = vmatpush1.msra.mxu0 %v768
        %770 = vmatprep.subr.mxu0 0.0
        %v771 = vand.u32 %v196, 4294901760
        %772 = vmatpush1.msra.mxu0 %v771
        %773 = vmatprep.subr.mxu0 0.0
        %v774 = vand.u32 %v197, 4294901760
        %775 = vmatpush1.msra.mxu0 %v774
        %776 = vmatprep.subr.mxu0 0.0
        %v777 = vand.u32 %v198, 4294901760
        %778 = vmatpush1.msra.mxu0 %v777
        %779 = vmatprep.subr.mxu0 0.0
        %v780 = vand.u32 %v199, 4294901760
        %781 = vmatpush1.msra.mxu0 %v780
        %782 = vmatprep.subr.mxu0 0.0
        %v783 = vand.u32 %v200, 4294901760
        %784 = vmatpush1.msra.mxu0 %v783
        %785 = vmatprep.subr.mxu0 0.0
        %v786 = vand.u32 %v201, 4294901760
        %787 = vmatpush1.msra.mxu0 %v786
        %788 = vmatprep.subr.mxu0 0.0
        %v789 = vand.u32 %v202, 4294901760
        %790 = vmatpush1.msra.mxu0 %v789
        %791 = vmatprep.subr.mxu0 0.0
        %v792 = vand.u32 %v203, 4294901760
        %793 = vmatpush1.msra.mxu0 %v792
        %794 = vmatprep.subr.mxu0 0.0
        %v795 = vand.u32 %v204, 4294901760
        %796 = vmatpush1.msra.mxu0 %v795
        %797 = vmatprep.subr.mxu0 0.0
        %v798 = vand.u32 %v205, 4294901760
        %799 = vmatpush1.msra.mxu0 %v798
        %800 = vmatprep.subr.mxu0 0.0
        %v801 = vand.u32 %v206, 4294901760
        %802 = vmatpush1.msra.mxu0 %v801
        %803 = vmatprep.subr.mxu0 0.0
        %v804 = vand.u32 %v207, 4294901760
        %805 = vmatpush1.msra.mxu0 %v804
        %806 = vmatprep.subr.mxu0 0.0
        %v807 = vand.u32 %v208, 4294901760
        %808 = vmatpush1.msra.mxu0 %v807
        %809 = vmatprep.subr.mxu0 0.0
        %v810 = vand.u32 %v209, 4294901760
        %811 = vmatpush1.msra.mxu0 %v810
        %812 = vmatprep.subr.mxu0 0.0
        %813 = vmatpush1.msra.mxu0 0.0
        %814 = vmatprep.subr.mxu0 0.0
        %815 = vmatpush1.msra.mxu0 0.0
        %816 = vmatprep.subr.mxu0 0.0
        %817 = vmatpush1.msra.mxu0 0.0
        %818 = vmatprep.subr.mxu0 0.0
        %819 = vmatpush1.msra.mxu0 0.0
        %820 = vmatprep.subr.mxu0 0.0
        %821 = vmatpush1.msra.mxu0 0.0
        %822 = vmatprep.subr.mxu0 0.0
        %823 = vmatpush1.msra.mxu0 0.0
        %824 = vmatprep.subr.mxu0 0.0
        %825 = vmatpush1.msra.mxu0 0.0
        %826 = vmatprep.subr.mxu0 0.0
        %827 = vmatpush1.msra.mxu0 0.0
        %828 = vmatprep.subr.mxu0 0.0
        %829 = vmatpush1.msra.mxu0 0.0
        %830 = vmatprep.subr.mxu0 0.0
        %831 = vmatpush1.msra.mxu0 0.0
        %832 = vmatprep.subr.mxu0 0.0
        %833 = vmatpush1.msra.mxu0 0.0
        %834 = vmatprep.subr.mxu0 0.0
        %835 = vmatpush1.msra.mxu0 0.0
        %836 = vmatprep.subr.mxu0 0.0
        %837 = vmatpush1.msra.mxu0 0.0
        %838 = vmatprep.subr.mxu0 0.0
        %839 = vmatpush1.msra.mxu0 0.0
        %840 = vmatprep.subr.mxu0 0.0
        %841 = vmatpush1.msra.mxu0 0.0
        %842 = vmatprep.subr.mxu0 0.0
        %843 = vmatpush1.msra.mxu0 0.0
        %844 = vmatprep.mubr.f32.mxu0 0.0
        %v845 = vand.u32 %v193, 4294901760
        %846 = vmatmul.mubr.f32.gmra.mrb[0].mxu0 %v845
        %v847 = vpop.f32.mrb[0].mxu0
        %v848 = vadd.f32 %v761, %v847
        %v849 = vpop.f32.mrb[0].mxu0
        %850 = vdwg.mxu0
        %v851 = vld [vmem:[%s2] sm:$0xf]
        %vm852 = vcmask 31744
        %v854 = vsel %vm852, %v848, 0
        %vm856 = vcmask 1043456
        %v858 = vsel %vm856, %v851, 0
        %860 = vmatprep.subr.mxu0 0.0
        %v861 = vand.u32 %v858, 4294901760
        %862 = vmatpush1.msra.mxu0 %v861
        %863 = vmatprep.subr.mxu0 0.0
        %864 = vmatpush1.msra.mxu0 0.0
        %865 = vmatprep.subr.mxu0 0.0
        %866 = vmatpush1.msra.mxu0 0.0
        %867 = vmatprep.subr.mxu0 0.0
        %868 = vmatpush1.msra.mxu0 0.0
        %869 = vmatprep.subr.mxu0 0.0
        %870 = vmatpush1.msra.mxu0 0.0
        %871 = vmatprep.subr.mxu0 0.0
        %872 = vmatpush1.msra.mxu0 0.0
        %873 = vmatprep.subr.mxu0 0.0
        %874 = vmatpush1.msra.mxu0 0.0
        %875 = vmatprep.subr.mxu0 0.0
        %876 = vmatpush1.msra.mxu0 0.0
        %877 = vmatprep.subr.mxu0 0.0
        %878 = vmatpush1.msra.mxu0 0.0
        %879 = vmatprep.subr.mxu0 0.0
        %880 = vmatpush1.msra.mxu0 0.0
        %881 = vmatprep.subr.mxu0 0.0
        %882 = vmatpush1.msra.mxu0 0.0
        %883 = vmatprep.subr.mxu0 0.0
        %884 = vmatpush1.msra.mxu0 0.0
        %885 = vmatprep.subr.mxu0 0.0
        %886 = vmatpush1.msra.mxu0 0.0
        %887 = vmatprep.subr.mxu0 0.0
        %888 = vmatpush1.msra.mxu0 0.0
        %889 = vmatprep.subr.mxu0 0.0
        %890 = vmatpush1.msra.mxu0 0.0
        %891 = vmatprep.subr.mxu0 0.0
        %892 = vmatpush1.msra.mxu0 0.0
        %893 = vmatprep.subr.mxu0 0.0
        %894 = vmatpush1.msra.mxu0 0.0
        %895 = vmatprep.subr.mxu0 0.0
        %896 = vmatpush1.msra.mxu0 0.0
        %897 = vmatprep.subr.mxu0 0.0
        %898 = vmatpush1.msra.mxu0 0.0
        %899 = vmatprep.subr.mxu0 0.0
        %900 = vmatpush1.msra.mxu0 0.0
        %901 = vmatprep.subr.mxu0 0.0
        %902 = vmatpush1.msra.mxu0 0.0
        %903 = vmatprep.subr.mxu0 0.0
        %904 = vmatpush1.msra.mxu0 0.0
        %905 = vmatprep.subr.mxu0 0.0
        %906 = vmatpush1.msra.mxu0 0.0
        %907 = vmatprep.subr.mxu0 0.0
        %908 = vmatpush1.msra.mxu0 0.0
        %909 = vmatprep.subr.mxu0 0.0
        %910 = vmatpush1.msra.mxu0 0.0
        %911 = vmatprep.subr.mxu0 0.0
        %912 = vmatpush1.msra.mxu0 0.0
        %913 = vmatprep.subr.mxu0 0.0
        %914 = vmatpush1.msra.mxu0 0.0
        %915 = vmatprep.subr.mxu0 0.0
        %916 = vmatpush1.msra.mxu0 0.0
        %917 = vmatprep.subr.mxu0 0.0
        %918 = vmatpush1.msra.mxu0 0.0
        %919 = vmatprep.subr.mxu0 0.0
        %920 = vmatpush1.msra.mxu0 0.0
        %921 = vmatprep.subr.mxu0 0.0
        %922 = vmatpush1.msra.mxu0 0.0
        %923 = vmatprep.subr.mxu0 0.0
        %924 = vmatpush1.msra.mxu0 0.0
        %925 = vmatprep.mubr.f32.mxu0 0.0
        %v926 = vand.u32 %v854, 4294901760
        %v927 = vsub.f32 %v854, %v926
        %v928 = vand.u32 %v927, 4294901760
        %v929 = vsub.f32 %v927, %v928
        %v930 = vand.u32 %v929, 4294901760
        %931 = vmatmul.mubr.f32.gmra.mrb[0].mxu0 %v930
        %v932 = vpop.f32.mrb[0].mxu0
        %v933 = vadd.f32 0.0, %v932
        %v934 = vpop.f32.mrb[0].mxu0
        %935 = vdwg.mxu0
        %936 = vmatprep.subr.mxu0 0.0
        %v937 = vand.u32 %v858, 4294901760
        %v938 = vsub.f32 %v858, %v937
        %v939 = vand.u32 %v938, 4294901760
        %v940 = vsub.f32 %v938, %v939
        %v941 = vand.u32 %v940, 4294901760
        %942 = vmatpush1.msra.mxu0 %v941
        %943 = vmatprep.subr.mxu0 0.0
        %944 = vmatpush1.msra.mxu0 0.0
        %945 = vmatprep.subr.mxu0 0.0
        %946 = vmatpush1.msra.mxu0 0.0
        %947 = vmatprep.subr.mxu0 0.0
        %948 = vmatpush1.msra.mxu0 0.0
        %949 = vmatprep.subr.mxu0 0.0
        %950 = vmatpush1.msra.mxu0 0.0
        %951 = vmatprep.subr.mxu0 0.0
        %952 = vmatpush1.msra.mxu0 0.0
        %953 = vmatprep.subr.mxu0 0.0
        %954 = vmatpush1.msra.mxu0 0.0
        %955 = vmatprep.subr.mxu0 0.0
        %956 = vmatpush1.msra.mxu0 0.0
        %957 = vmatprep.subr.mxu0 0.0
        %958 = vmatpush1.msra.mxu0 0.0
        %959 = vmatprep.subr.mxu0 0.0
        %960 = vmatpush1.msra.mxu0 0.0
        %961 = vmatprep.subr.mxu0 0.0
        %962 = vmatpush1.msra.mxu0 0.0
        %963 = vmatprep.subr.mxu0 0.0
        %964 = vmatpush1.msra.mxu0 0.0
        %965 = vmatprep.subr.mxu0 0.0
        %966 = vmatpush1.msra.mxu0 0.0
        %967 = vmatprep.subr.mxu0 0.0
        %968 = vmatpush1.msra.mxu0 0.0
        %969 = vmatprep.subr.mxu0 0.0
        %970 = vmatpush1.msra.mxu0 0.0
        %971 = vmatprep.subr.mxu0 0.0
        %972 = vmatpush1.msra.mxu0 0.0
        %973 = vmatprep.subr.mxu0 0.0
        %974 = vmatpush1.msra.mxu0 0.0
        %975 = vmatprep.subr.mxu0 0.0
        %976 = vmatpush1.msra.mxu0 0.0
        %977 = vmatprep.subr.mxu0 0.0
        %978 = vmatpush1.msra.mxu0 0.0
        %979 = vmatprep.subr.mxu0 0.0
        %980 = vmatpush1.msra.mxu0 0.0
        %981 = vmatprep.subr.mxu0 0.0
        %982 = vmatpush1.msra.mxu0 0.0
        %983 = vmatprep.subr.mxu0 0.0
        %984 = vmatpush1.msra.mxu0 0.0
        %985 = vmatprep.subr.mxu0 0.0
        %986 = vmatpush1.msra.mxu0 0.0
        %987 = vmatprep.subr.mxu0 0.0
        %988 = vmatpush1.msra.mxu0 0.0
        %989 = vmatprep.subr.mxu0 0.0
        %990 = vmatpush1.msra.mxu0 0.0
        %991 = vmatprep.subr.mxu0 0.0
        %992 = vmatpush1.msra.mxu0 0.0
        %993 = vmatprep.subr.mxu0 0.0
        %994 = vmatpush1.msra.mxu0 0.0
        %995 = vmatprep.subr.mxu0 0.0
        %996 = vmatpush1.msra.mxu0 0.0
        %997 = vmatprep.subr.mxu0 0.0
        %998 = vmatpush1.msra.mxu0 0.0
        %999 = vmatprep.subr.mxu0 0.0
        %1000 = vmatpush1.msra.mxu0 0.0
        %1001 = vmatprep.subr.mxu0 0.0
        %1002 = vmatpush1.msra.mxu0 0.0
        %1003 = vmatprep.subr.mxu0 0.0
        %1004 = vmatpush1.msra.mxu0 0.0
        %1005 = vmatprep.mubr.f32.mxu0 0.0
        %v1006 = vand.u32 %v854, 4294901760
        %1007 = vmatmul.mubr.f32.gmra.mrb[0].mxu0 %v1006
        %v1008 = vpop.f32.mrb[0].mxu0
        %v1009 = vadd.f32 %v933, %v1008
        %v1010 = vpop.f32.mrb[0].mxu0
        %1011 = vdwg.mxu0
        %1012 = vmatprep.subr.mxu0 0.0
        %v1013 = vand.u32 %v858, 4294901760
        %v1014 = vsub.f32 %v858, %v1013
        %1015 = vmatpush1.msra.mxu0 %v1014
        %1016 = vmatprep.subr.mxu0 0.0
        %1017 = vmatpush1.msra.mxu0 0.0
        %1018 = vmatprep.subr.mxu0 0.0
        %1019 = vmatpush1.msra.mxu0 0.0
        %1020 = vmatprep.subr.mxu0 0.0
        %1021 = vmatpush1.msra.mxu0 0.0
        %1022 = vmatprep.subr.mxu0 0.0
        %1023 = vmatpush1.msra.mxu0 0.0
        %1024 = vmatprep.subr.mxu0 0.0
        %1025 = vmatpush1.msra.mxu0 0.0
        %1026 = vmatprep.subr.mxu0 0.0
        %1027 = vmatpush1.msra.mxu0 0.0
        %1028 = vmatprep.subr.mxu0 0.0
        %1029 = vmatpush1.msra.mxu0 0.0
        %1030 = vmatprep.subr.mxu0 0.0
        %1031 = vmatpush1.msra.mxu0 0.0
        %1032 = vmatprep.subr.mxu0 0.0
        %1033 = vmatpush1.msra.mxu0 0.0
        %1034 = vmatprep.subr.mxu0 0.0
        %1035 = vmatpush1.msra.mxu0 0.0
        %1036 = vmatprep.subr.mxu0 0.0
        %1037 = vmatpush1.msra.mxu0 0.0
        %1038 = vmatprep.subr.mxu0 0.0
        %1039 = vmatpush1.msra.mxu0 0.0
        %1040 = vmatprep.subr.mxu0 0.0
        %1041 = vmatpush1.msra.mxu0 0.0
        %1042 = vmatprep.subr.mxu0 0.0
        %1043 = vmatpush1.msra.mxu0 0.0
        %1044 = vmatprep.subr.mxu0 0.0
        %1045 = vmatpush1.msra.mxu0 0.0
        %1046 = vmatprep.subr.mxu0 0.0
        %1047 = vmatpush1.msra.mxu0 0.0
        %1048 = vmatprep.subr.mxu0 0.0
        %1049 = vmatpush1.msra.mxu0 0.0
        %1050 = vmatprep.subr.mxu0 0.0
        %1051 = vmatpush1.msra.mxu0 0.0
        %1052 = vmatprep.subr.mxu0 0.0
        %1053 = vmatpush1.msra.mxu0 0.0
        %1054 = vmatprep.subr.mxu0 0.0
        %1055 = vmatpush1.msra.mxu0 0.0
        %1056 = vmatprep.subr.mxu0 0.0
        %1057 = vmatpush1.msra.mxu0 0.0
        %1058 = vmatprep.subr.mxu0 0.0
        %1059 = vmatpush1.msra.mxu0 0.0
        %1060 = vmatprep.subr.mxu0 0.0
        %1061 = vmatpush1.msra.mxu0 0.0
        %1062 = vmatprep.subr.mxu0 0.0
        %1063 = vmatpush1.msra.mxu0 0.0
        %1064 = vmatprep.subr.mxu0 0.0
        %1065 = vmatpush1.msra.mxu0 0.0
        %1066 = vmatprep.subr.mxu0 0.0
        %1067 = vmatpush1.msra.mxu0 0.0
        %1068 = vmatprep.subr.mxu0 0.0
        %1069 = vmatpush1.msra.mxu0 0.0
        %1070 = vmatprep.subr.mxu0 0.0
        %1071 = vmatpush1.msra.mxu0 0.0
        %1072 = vmatprep.subr.mxu0 0.0
        %1073 = vmatpush1.msra.mxu0 0.0
        %1074 = vmatprep.subr.mxu0 0.0
        %1075 = vmatpush1.msra.mxu0 0.0
        %1076 = vmatprep.subr.mxu0 0.0
        %1077 = vmatpush1.msra.mxu0 0.0
        %1078 = vmatprep.mubr.f32.mxu0 0.0
        %v1079 = vand.u32 %v854, 4294901760
        %v1080 = vsub.f32 %v854, %v1079
        %1081 = vmatmul.mubr.f32.gmra.mrb[0].mxu0 %v1080
        %v1082 = vpop.f32.mrb[0].mxu0
        %v1083 = vadd.f32 %v1009, %v1082
        %v1084 = vpop.f32.mrb[0].mxu0
        %1085 = vdwg.mxu0
        %1086 = vmatprep.subr.mxu0 0.0
        %v1087 = vand.u32 %v858, 4294901760
        %1088 = vmatpush1.msra.mxu0 %v1087
        %1089 = vmatprep.subr.mxu0 0.0
        %1090 = vmatpush1.msra.mxu0 0.0
        %1091 = vmatprep.subr.mxu0 0.0
        %1092 = vmatpush1.msra.mxu0 0.0
        %1093 = vmatprep.subr.mxu0 0.0
        %1094 = vmatpush1.msra.mxu0 0.0
        %1095 = vmatprep.subr.mxu0 0.0
        %1096 = vmatpush1.msra.mxu0 0.0
        %1097 = vmatprep.subr.mxu0 0.0
        %1098 = vmatpush1.msra.mxu0 0.0
        %1099 = vmatprep.subr.mxu0 0.0
        %1100 = vmatpush1.msra.mxu0 0.0
        %1101 = vmatprep.subr.mxu0 0.0
        %1102 = vmatpush1.msra.mxu0 0.0
        %1103 = vmatprep.subr.mxu0 0.0
        %1104 = vmatpush1.msra.mxu0 0.0
        %1105 = vmatprep.subr.mxu0 0.0
        %1106 = vmatpush1.msra.mxu0 0.0
        %1107 = vmatprep.subr.mxu0 0.0
        %1108 = vmatpush1.msra.mxu0 0.0
        %1109 = vmatprep.subr.mxu0 0.0
        %1110 = vmatpush1.msra.mxu0 0.0
        %1111 = vmatprep.subr.mxu0 0.0
        %1112 = vmatpush1.msra.mxu0 0.0
        %1113 = vmatprep.subr.mxu0 0.0
        %1114 = vmatpush1.msra.mxu0 0.0
        %1115 = vmatprep.subr.mxu0 0.0
        %1116 = vmatpush1.msra.mxu0 0.0
        %1117 = vmatprep.subr.mxu0 0.0
        %1118 = vmatpush1.msra.mxu0 0.0
        %1119 = vmatprep.subr.mxu0 0.0
        %1120 = vmatpush1.msra.mxu0 0.0
        %1121 = vmatprep.subr.mxu0 0.0
        %1122 = vmatpush1.msra.mxu0 0.0
        %1123 = vmatprep.subr.mxu0 0.0
        %1124 = vmatpush1.msra.mxu0 0.0
        %1125 = vmatprep.subr.mxu0 0.0
        %1126 = vmatpush1.msra.mxu0 0.0
        %1127 = vmatprep.subr.mxu0 0.0
        %1128 = vmatpush1.msra.mxu0 0.0
        %1129 = vmatprep.subr.mxu0 0.0
        %1130 = vmatpush1.msra.mxu0 0.0
        %1131 = vmatprep.subr.mxu0 0.0
        %1132 = vmatpush1.msra.mxu0 0.0
        %1133 = vmatprep.subr.mxu0 0.0
        %1134 = vmatpush1.msra.mxu0 0.0
        %1135 = vmatprep.subr.mxu0 0.0
        %1136 = vmatpush1.msra.mxu0 0.0
        %1137 = vmatprep.subr.mxu0 0.0
        %1138 = vmatpush1.msra.mxu0 0.0
        %1139 = vmatprep.subr.mxu0 0.0
        %1140 = vmatpush1.msra.mxu0 0.0
        %1141 = vmatprep.subr.mxu0 0.0
        %1142 = vmatpush1.msra.mxu0 0.0
        %1143 = vmatprep.subr.mxu0 0.0
        %1144 = vmatpush1.msra.mxu0 0.0
        %1145 = vmatprep.subr.mxu0 0.0
        %1146 = vmatpush1.msra.mxu0 0.0
        %1147 = vmatprep.subr.mxu0 0.0
        %1148 = vmatpush1.msra.mxu0 0.0
        %1149 = vmatprep.subr.mxu0 0.0
        %1150 = vmatpush1.msra.mxu0 0.0
        %1151 = vmatprep.mubr.f32.mxu0 0.0
        %v1152 = vand.u32 %v854, 4294901760
        %v1153 = vsub.f32 %v854, %v1152
        %v1154 = vand.u32 %v1153, 4294901760
        %1155 = vmatmul.mubr.f32.gmra.mrb[0].mxu0 %v1154
        %v1156 = vpop.f32.mrb[0].mxu0
        %v1157 = vadd.f32 %v1083, %v1156
        %v1158 = vpop.f32.mrb[0].mxu0
        %1159 = vdwg.mxu0
        %1160 = vmatprep.subr.mxu0 0.0
        %v1161 = vand.u32 %v858, 4294901760
        %v1162 = vsub.f32 %v858, %v1161
        %v1163 = vand.u32 %v1162, 4294901760
        %1164 = vmatpush1.msra.mxu0 %v1163
        %1165 = vmatprep.subr.mxu0 0.0
        %1166 = vmatpush1.msra.mxu0 0.0
        %1167 = vmatprep.subr.mxu0 0.0
        %1168 = vmatpush1.msra.mxu0 0.0
        %1169 = vmatprep.subr.mxu0 0.0
        %1170 = vmatpush1.msra.mxu0 0.0
        %1171 = vmatprep.subr.mxu0 0.0
        %1172 = vmatpush1.msra.mxu0 0.0
        %1173 = vmatprep.subr.mxu0 0.0
        %1174 = vmatpush1.msra.mxu0 0.0
        %1175 = vmatprep.subr.mxu0 0.0
        %1176 = vmatpush1.msra.mxu0 0.0
        %1177 = vmatprep.subr.mxu0 0.0
        %1178 = vmatpush1.msra.mxu0 0.0
        %1179 = vmatprep.subr.mxu0 0.0
        %1180 = vmatpush1.msra.mxu0 0.0
        %1181 = vmatprep.subr.mxu0 0.0
        %1182 = vmatpush1.msra.mxu0 0.0
        %1183 = vmatprep.subr.mxu0 0.0
        %1184 = vmatpush1.msra.mxu0 0.0
        %1185 = vmatprep.subr.mxu0 0.0
        %1186 = vmatpush1.msra.mxu0 0.0
        %1187 = vmatprep.subr.mxu0 0.0
        %1188 = vmatpush1.msra.mxu0 0.0
        %1189 = vmatprep.subr.mxu0 0.0
        %1190 = vmatpush1.msra.mxu0 0.0
        %1191 = vmatprep.subr.mxu0 0.0
        %1192 = vmatpush1.msra.mxu0 0.0
        %1193 = vmatprep.subr.mxu0 0.0
        %1194 = vmatpush1.msra.mxu0 0.0
        %1195 = vmatprep.subr.mxu0 0.0
        %1196 = vmatpush1.msra.mxu0 0.0
        %1197 = vmatprep.subr.mxu0 0.0
        %1198 = vmatpush1.msra.mxu0 0.0
        %1199 = vmatprep.subr.mxu0 0.0
        %1200 = vmatpush1.msra.mxu0 0.0
        %1201 = vmatprep.subr.mxu0 0.0
        %1202 = vmatpush1.msra.mxu0 0.0
        %1203 = vmatprep.subr.mxu0 0.0
        %1204 = vmatpush1.msra.mxu0 0.0
        %1205 = vmatprep.subr.mxu0 0.0
        %1206 = vmatpush1.msra.mxu0 0.0
        %1207 = vmatprep.subr.mxu0 0.0
        %1208 = vmatpush1.msra.mxu0 0.0
        %1209 = vmatprep.subr.mxu0 0.0
        %1210 = vmatpush1.msra.mxu0 0.0
        %1211 = vmatprep.subr.mxu0 0.0
        %1212 = vmatpush1.msra.mxu0 0.0
        %1213 = vmatprep.subr.mxu0 0.0
        %1214 = vmatpush1.msra.mxu0 0.0
        %1215 = vmatprep.subr.mxu0 0.0
        %1216 = vmatpush1.msra.mxu0 0.0
        %1217 = vmatprep.subr.mxu0 0.0
        %1218 = vmatpush1.msra.mxu0 0.0
        %1219 = vmatprep.subr.mxu0 0.0
        %1220 = vmatpush1.msra.mxu0 0.0
        %1221 = vmatprep.subr.mxu0 0.0
        %1222 = vmatpush1.msra.mxu0 0.0
        %1223 = vmatprep.subr.mxu0 0.0
        %1224 = vmatpush1.msra.mxu0 0.0
        %1225 = vmatprep.subr.mxu0 0.0
        %1226 = vmatpush1.msra.mxu0 0.0
        %1227 = vmatprep.mubr.f32.mxu0 0.0
        %v1228 = vand.u32 %v854, 4294901760
        %1229 = vmatmul.mubr.f32.gmra.mrb[0].mxu0 %v1228
        %v1230 = vpop.f32.mrb[0].mxu0
        %v1231 = vadd.f32 %v1157, %v1230
        %v1232 = vpop.f32.mrb[0].mxu0
        %1233 = vdwg.mxu0
        %1234 = vmatprep.subr.mxu0 0.0
        %v1235 = vand.u32 %v858, 4294901760
        %1236 = vmatpush1.msra.mxu0 %v1235
        %1237 = vmatprep.subr.mxu0 0.0
        %1238 = vmatpush1.msra.mxu0 0.0
        %1239 = vmatprep.subr.mxu0 0.0
        %1240 = vmatpush1.msra.mxu0 0.0
        %1241 = vmatprep.subr.mxu0 0.0
        %1242 = vmatpush1.msra.mxu0 0.0
        %1243 = vmatprep.subr.mxu0 0.0
        %1244 = vmatpush1.msra.mxu0 0.0
        %1245 = vmatprep.subr.mxu0 0.0
        %1246 = vmatpush1.msra.mxu0 0.0
        %1247 = vmatprep.subr.mxu0 0.0
        %1248 = vmatpush1.msra.mxu0 0.0
        %1249 = vmatprep.subr.mxu0 0.0
        %1250 = vmatpush1.msra.mxu0 0.0
        %1251 = vmatprep.subr.mxu0 0.0
        %1252 = vmatpush1.msra.mxu0 0.0
        %1253 = vmatprep.subr.mxu0 0.0
        %1254 = vmatpush1.msra.mxu0 0.0
        %1255 = vmatprep.subr.mxu0 0.0
        %1256 = vmatpush1.msra.mxu0 0.0
        %1257 = vmatprep.subr.mxu0 0.0
        %1258 = vmatpush1.msra.mxu0 0.0
        %1259 = vmatprep.subr.mxu0 0.0
        %1260 = vmatpush1.msra.mxu0 0.0
        %1261 = vmatprep.subr.mxu0 0.0
        %1262 = vmatpush1.msra.mxu0 0.0
        %1263 = vmatprep.subr.mxu0 0.0
        %1264 = vmatpush1.msra.mxu0 0.0
        %1265 = vmatprep.subr.mxu0 0.0
        %1266 = vmatpush1.msra.mxu0 0.0
        %1267 = vmatprep.subr.mxu0 0.0
        %1268 = vmatpush1.msra.mxu0 0.0
        %1269 = vmatprep.subr.mxu0 0.0
        %1270 = vmatpush1.msra.mxu0 0.0
        %1271 = vmatprep.subr.mxu0 0.0
        %1272 = vmatpush1.msra.mxu0 0.0
        %1273 = vmatprep.subr.mxu0 0.0
        %1274 = vmatpush1.msra.mxu0 0.0
        %1275 = vmatprep.subr.mxu0 0.0
        %1276 = vmatpush1.msra.mxu0 0.0
        %1277 = vmatprep.subr.mxu0 0.0
        %1278 = vmatpush1.msra.mxu0 0.0
        %1279 = vmatprep.subr.mxu0 0.0
        %1280 = vmatpush1.msra.mxu0 0.0
        %1281 = vmatprep.subr.mxu0 0.0
        %1282 = vmatpush1.msra.mxu0 0.0
        %1283 = vmatprep.subr.mxu0 0.0
        %1284 = vmatpush1.msra.mxu0 0.0
        %1285 = vmatprep.subr.mxu0 0.0
        %1286 = vmatpush1.msra.mxu0 0.0
        %1287 = vmatprep.subr.mxu0 0.0
        %1288 = vmatpush1.msra.mxu0 0.0
        %1289 = vmatprep.subr.mxu0 0.0
        %1290 = vmatpush1.msra.mxu0 0.0
        %1291 = vmatprep.subr.mxu0 0.0
        %1292 = vmatpush1.msra.mxu0 0.0
        %1293 = vmatprep.subr.mxu0 0.0
        %1294 = vmatpush1.msra.mxu0 0.0
        %1295 = vmatprep.subr.mxu0 0.0
        %1296 = vmatpush1.msra.mxu0 0.0
        %1297 = vmatprep.subr.mxu0 0.0
        %1298 = vmatpush1.msra.mxu0 0.0
        %1299 = vmatprep.mubr.f32.mxu0 0.0
        %v1300 = vand.u32 %v854, 4294901760
        %1301 = vmatmul.mubr.f32.gmra.mrb[0].mxu0 %v1300
        %v1302 = vpop.f32.mrb[0].mxu0
        %v1303 = vadd.f32 %v1231, %v1302
        %v1304 = vpop.f32.mrb[0].mxu0
        %1305 = vdwg.mxu0
        %v1306 = vsub.f32 %v193, %v1303
        %v1307 = vmul.f32 %v1306, %v1306
        %1308 = vmatprep.subr.mxu0 0.0
        %v1309 = vand.u32 %v194, 4294901760
        %1310 = vmatpush1.msra.mxu0 %v1309
        %1311 = vmatprep.subr.mxu0 0.0
        %v1312 = vand.u32 %v195, 4294901760
        %1313 = vmatpush1.msra.mxu0 %v1312
        %1314 = vmatprep.subr.mxu0 0.0
        %v1315 = vand.u32 %v196, 4294901760
        %1316 = vmatpush1.msra.mxu0 %v1315
        %1317 = vmatprep.subr.mxu0 0.0
        %v1318 = vand.u32 %v197, 4294901760
        %1319 = vmatpush1.msra.mxu0 %v1318
        %1320 = vmatprep.subr.mxu0 0.0
        %v1321 = vand.u32 %v198, 4294901760
        %1322 = vmatpush1.msra.mxu0 %v1321
        %1323 = vmatprep.subr.mxu0 0.0
        %v1324 = vand.u32 %v199, 4294901760
        %1325 = vmatpush1.msra.mxu0 %v1324
        %1326 = vmatprep.subr.mxu0 0.0
        %v1327 = vand.u32 %v200, 4294901760
        %1328 = vmatpush1.msra.mxu0 %v1327
        %1329 = vmatprep.subr.mxu0 0.0
        %v1330 = vand.u32 %v201, 4294901760
        %1331 = vmatpush1.msra.mxu0 %v1330
        %1332 = vmatprep.subr.mxu0 0.0
        %v1333 = vand.u32 %v202, 4294901760
        %1334 = vmatpush1.msra.mxu0 %v1333
        %1335 = vmatprep.subr.mxu0 0.0
        %v1336 = vand.u32 %v203, 4294901760
        %1337 = vmatpush1.msra.mxu0 %v1336
        %1338 = vmatprep.subr.mxu0 0.0
        %v1339 = vand.u32 %v204, 4294901760
        %1340 = vmatpush1.msra.mxu0 %v1339
        %1341 = vmatprep.subr.mxu0 0.0
        %v1342 = vand.u32 %v205, 4294901760
        %1343 = vmatpush1.msra.mxu0 %v1342
        %1344 = vmatprep.subr.mxu0 0.0
        %v1345 = vand.u32 %v206, 4294901760
        %1346 = vmatpush1.msra.mxu0 %v1345
        %1347 = vmatprep.subr.mxu0 0.0
        %v1348 = vand.u32 %v207, 4294901760
        %1349 = vmatpush1.msra.mxu0 %v1348
        %1350 = vmatprep.subr.mxu0 0.0
        %v1351 = vand.u32 %v208, 4294901760
        %1352 = vmatpush1.msra.mxu0 %v1351
        %1353 = vmatprep.subr.mxu0 0.0
        %v1354 = vand.u32 %v209, 4294901760
        %1355 = vmatpush1.msra.mxu0 %v1354
        %1356 = vmatprep.subr.mxu0 0.0
        %1357 = vmatpush1.msra.mxu0 0.0
        %1358 = vmatprep.subr.mxu0 0.0
        %1359 = vmatpush1.msra.mxu0 0.0
        %1360 = vmatprep.subr.mxu0 0.0
        %1361 = vmatpush1.msra.mxu0 0.0
        %1362 = vmatprep.subr.mxu0 0.0
        %1363 = vmatpush1.msra.mxu0 0.0
        %1364 = vmatprep.subr.mxu0 0.0
        %1365 = vmatpush1.msra.mxu0 0.0
        %1366 = vmatprep.subr.mxu0 0.0
        %1367 = vmatpush1.msra.mxu0 0.0
        %1368 = vmatprep.subr.mxu0 0.0
        %1369 = vmatpush1.msra.mxu0 0.0
        %1370 = vmatprep.subr.mxu0 0.0
        %1371 = vmatpush1.msra.mxu0 0.0
        %1372 = vmatprep.subr.mxu0 0.0
        %1373 = vmatpush1.msra.mxu0 0.0
        %1374 = vmatprep.subr.mxu0 0.0
        %1375 = vmatpush1.msra.mxu0 0.0
        %1376 = vmatprep.subr.mxu0 0.0
        %1377 = vmatpush1.msra.mxu0 0.0
        %1378 = vmatprep.subr.mxu0 0.0
        %1379 = vmatpush1.msra.mxu0 0.0
        %1380 = vmatprep.subr.mxu0 0.0
        %1381 = vmatpush1.msra.mxu0 0.0
        %1382 = vmatprep.subr.mxu0 0.0
        %1383 = vmatpush1.msra.mxu0 0.0
        %1384 = vmatprep.subr.mxu0 0.0
        %1385 = vmatpush1.msra.mxu0 0.0
        %1386 = vmatprep.subr.mxu0 0.0
        %1387 = vmatpush1.msra.mxu0 0.0
        %1388 = vmatprep.mubr.f32.mxu0 0.0
        %v1389 = vand.u32 %v1307, 4294901760
        %v1390 = vsub.f32 %v1307, %v1389
        %v1391 = vand.u32 %v1390, 4294901760
        %v1392 = vsub.f32 %v1390, %v1391
        %v1393 = vand.u32 %v1392, 4294901760
        %1394 = vmatmul.mubr.f32.gmra.mrb[0].mxu0 %v1393
        %v1395 = vpop.f32.mrb[0].mxu0
        %v1396 = vadd.f32 1e-05, %v1395
        %v1397 = vpop.f32.mrb[0].mxu0
        %1398 = vdwg.mxu0
        %1399 = vmatprep.subr.mxu0 0.0
        %v1400 = vand.u32 %v194, 4294901760
        %v1401 = vsub.f32 %v194, %v1400
        %v1402 = vand.u32 %v1401, 4294901760
        %v1403 = vsub.f32 %v1401, %v1402
        %v1404 = vand.u32 %v1403, 4294901760
        %1405 = vmatpush1.msra.mxu0 %v1404
        %1406 = vmatprep.subr.mxu0 0.0
        %v1407 = vand.u32 %v195, 4294901760
        %v1408 = vsub.f32 %v195, %v1407
        %v1409 = vand.u32 %v1408, 4294901760
        %v1410 = vsub.f32 %v1408, %v1409
        %v1411 = vand.u32 %v1410, 4294901760
        %1412 = vmatpush1.msra.mxu0 %v1411
        %1413 = vmatprep.subr.mxu0 0.0
        %v1414 = vand.u32 %v196, 4294901760
        %v1415 = vsub.f32 %v196, %v1414
        %v1416 = vand.u32 %v1415, 4294901760
        %v1417 = vsub.f32 %v1415, %v1416
        %v1418 = vand.u32 %v1417, 4294901760
        %1419 = vmatpush1.msra.mxu0 %v1418
        %1420 = vmatprep.subr.mxu0 0.0
        %v1421 = vand.u32 %v197, 4294901760
        %v1422 = vsub.f32 %v197, %v1421
        %v1423 = vand.u32 %v1422, 4294901760
        %v1424 = vsub.f32 %v1422, %v1423
        %v1425 = vand.u32 %v1424, 4294901760
        %1426 = vmatpush1.msra.mxu0 %v1425
        %1427 = vmatprep.subr.mxu0 0.0
        %v1428 = vand.u32 %v198, 4294901760
        %v1429 = vsub.f32 %v198, %v1428
        %v1430 = vand.u32 %v1429, 4294901760
        %v1431 = vsub.f32 %v1429, %v1430
        %v1432 = vand.u32 %v1431, 4294901760
        %1433 = vmatpush1.msra.mxu0 %v1432
        %1434 = vmatprep.subr.mxu0 0.0
        %v1435 = vand.u32 %v199, 4294901760
        %v1436 = vsub.f32 %v199, %v1435
        %v1437 = vand.u32 %v1436, 4294901760
        %v1438 = vsub.f32 %v1436, %v1437
        %v1439 = vand.u32 %v1438, 4294901760
        %1440 = vmatpush1.msra.mxu0 %v1439
        %1441 = vmatprep.subr.mxu0 0.0
        %v1442 = vand.u32 %v200, 4294901760
        %v1443 = vsub.f32 %v200, %v1442
        %v1444 = vand.u32 %v1443, 4294901760
        %v1445 = vsub.f32 %v1443, %v1444
        %v1446 = vand.u32 %v1445, 4294901760
        %1447 = vmatpush1.msra.mxu0 %v1446
        %1448 = vmatprep.subr.mxu0 0.0
        %v1449 = vand.u32 %v201, 4294901760
        %v1450 = vsub.f32 %v201, %v1449
        %v1451 = vand.u32 %v1450, 4294901760
        %v1452 = vsub.f32 %v1450, %v1451
        %v1453 = vand.u32 %v1452, 4294901760
        %1454 = vmatpush1.msra.mxu0 %v1453
        %1455 = vmatprep.subr.mxu0 0.0
        %v1456 = vand.u32 %v202, 4294901760
        %v1457 = vsub.f32 %v202, %v1456
        %v1458 = vand.u32 %v1457, 4294901760
        %v1459 = vsub.f32 %v1457, %v1458
        %v1460 = vand.u32 %v1459, 4294901760
        %1461 = vmatpush1.msra.mxu0 %v1460
        %1462 = vmatprep.subr.mxu0 0.0
        %v1463 = vand.u32 %v203, 4294901760
        %v1464 = vsub.f32 %v203, %v1463
        %v1465 = vand.u32 %v1464, 4294901760
        %v1466 = vsub.f32 %v1464, %v1465
        %v1467 = vand.u32 %v1466, 4294901760
        %1468 = vmatpush1.msra.mxu0 %v1467
        %1469 = vmatprep.subr.mxu0 0.0
        %v1470 = vand.u32 %v204, 4294901760
        %v1471 = vsub.f32 %v204, %v1470
        %v1472 = vand.u32 %v1471, 4294901760
        %v1473 = vsub.f32 %v1471, %v1472
        %v1474 = vand.u32 %v1473, 4294901760
        %1475 = vmatpush1.msra.mxu0 %v1474
        %1476 = vmatprep.subr.mxu0 0.0
        %v1477 = vand.u32 %v205, 4294901760
        %v1478 = vsub.f32 %v205, %v1477
        %v1479 = vand.u32 %v1478, 4294901760
        %v1480 = vsub.f32 %v1478, %v1479
        %v1481 = vand.u32 %v1480, 4294901760
        %1482 = vmatpush1.msra.mxu0 %v1481
        %1483 = vmatprep.subr.mxu0 0.0
        %v1484 = vand.u32 %v206, 4294901760
        %v1485 = vsub.f32 %v206, %v1484
        %v1486 = vand.u32 %v1485, 4294901760
        %v1487 = vsub.f32 %v1485, %v1486
        %v1488 = vand.u32 %v1487, 4294901760
        %1489 = vmatpush1.msra.mxu0 %v1488
        %1490 = vmatprep.subr.mxu0 0.0
        %v1491 = vand.u32 %v207, 4294901760
        %v1492 = vsub.f32 %v207, %v1491
        %v1493 = vand.u32 %v1492, 4294901760
        %v1494 = vsub.f32 %v1492, %v1493
        %v1495 = vand.u32 %v1494, 4294901760
        %1496 = vmatpush1.msra.mxu0 %v1495
        %1497 = vmatprep.subr.mxu0 0.0
        %v1498 = vand.u32 %v208, 4294901760
        %v1499 = vsub.f32 %v208, %v1498
        %v1500 = vand.u32 %v1499, 4294901760
        %v1501 = vsub.f32 %v1499, %v1500
        %v1502 = vand.u32 %v1501, 4294901760
        %1503 = vmatpush1.msra.mxu0 %v1502
        %1504 = vmatprep.subr.mxu0 0.0
        %v1505 = vand.u32 %v209, 4294901760
        %v1506 = vsub.f32 %v209, %v1505
        %v1507 = vand.u32 %v1506, 4294901760
        %v1508 = vsub.f32 %v1506, %v1507
        %v1509 = vand.u32 %v1508, 4294901760
        %1510 = vmatpush1.msra.mxu0 %v1509
        %1511 = vmatprep.subr.mxu0 0.0
        %1512 = vmatpush1.msra.mxu0 0.0
        %1513 = vmatprep.subr.mxu0 0.0
        %1514 = vmatpush1.msra.mxu0 0.0
        %1515 = vmatprep.subr.mxu0 0.0
        %1516 = vmatpush1.msra.mxu0 0.0
        %1517 = vmatprep.subr.mxu0 0.0
        %1518 = vmatpush1.msra.mxu0 0.0
        %1519 = vmatprep.subr.mxu0 0.0
        %1520 = vmatpush1.msra.mxu0 0.0
        %1521 = vmatprep.subr.mxu0 0.0
        %1522 = vmatpush1.msra.mxu0 0.0
        %1523 = vmatprep.subr.mxu0 0.0
        %1524 = vmatpush1.msra.mxu0 0.0
        %1525 = vmatprep.subr.mxu0 0.0
        %1526 = vmatpush1.msra.mxu0 0.0
        %1527 = vmatprep.subr.mxu0 0.0
        %1528 = vmatpush1.msra.mxu0 0.0
        %1529 = vmatprep.subr.mxu0 0.0
        %1530 = vmatpush1.msra.mxu0 0.0
        %1531 = vmatprep.subr.mxu0 0.0
        %1532 = vmatpush1.msra.mxu0 0.0
        %1533 = vmatprep.subr.mxu0 0.0
        %1534 = vmatpush1.msra.mxu0 0.0
        %1535 = vmatprep.subr.mxu0 0.0
        %1536 = vmatpush1.msra.mxu0 0.0
        %1537 = vmatprep.subr.mxu0 0.0
        %1538 = vmatpush1.msra.mxu0 0.0
        %1539 = vmatprep.subr.mxu0 0.0
        %1540 = vmatpush1.msra.mxu0 0.0
        %1541 = vmatprep.subr.mxu0 0.0
        %1542 = vmatpush1.msra.mxu0 0.0
        %1543 = vmatprep.mubr.f32.mxu0 0.0
        %v1544 = vand.u32 %v1307, 4294901760
        %1545 = vmatmul.mubr.f32.gmra.mrb[0].mxu0 %v1544
        %v1546 = vpop.f32.mrb[0].mxu0
        %v1547 = vadd.f32 %v1396, %v1546
        %v1548 = vpop.f32.mrb[0].mxu0
        %1549 = vdwg.mxu0
        %1550 = vmatprep.subr.mxu0 0.0
        %v1551 = vand.u32 %v194, 4294901760
        %v1552 = vsub.f32 %v194, %v1551
        %1553 = vmatpush1.msra.mxu0 %v1552
        %1554 = vmatprep.subr.mxu0 0.0
        %v1555 = vand.u32 %v195, 4294901760
        %v1556 = vsub.f32 %v195, %v1555
        %1557 = vmatpush1.msra.mxu0 %v1556
        %1558 = vmatprep.subr.mxu0 0.0
        %v1559 = vand.u32 %v196, 4294901760
        %v1560 = vsub.f32 %v196, %v1559
        %1561 = vmatpush1.msra.mxu0 %v1560
        %1562 = vmatprep.subr.mxu0 0.0
        %v1563 = vand.u32 %v197, 4294901760
        %v1564 = vsub.f32 %v197, %v1563
        %1565 = vmatpush1.msra.mxu0 %v1564
        %1566 = vmatprep.subr.mxu0 0.0
        %v1567 = vand.u32 %v198, 4294901760
        %v1568 = vsub.f32 %v198, %v1567
        %1569 = vmatpush1.msra.mxu0 %v1568
        %1570 = vmatprep.subr.mxu0 0.0
        %v1571 = vand.u32 %v199, 4294901760
        %v1572 = vsub.f32 %v199, %v1571
        %1573 = vmatpush1.msra.mxu0 %v1572
        %1574 = vmatprep.subr.mxu0 0.0
        %v1575 = vand.u32 %v200, 4294901760
        %v1576 = vsub.f32 %v200, %v1575
        %1577 = vmatpush1.msra.mxu0 %v1576
        %1578 = vmatprep.subr.mxu0 0.0
        %v1579 = vand.u32 %v201, 4294901760
        %v1580 = vsub.f32 %v201, %v1579
        %1581 = vmatpush1.msra.mxu0 %v1580
        %1582 = vmatprep.subr.mxu0 0.0
        %v1583 = vand.u32 %v202, 4294901760
        %v1584 = vsub.f32 %v202, %v1583
        %1585 = vmatpush1.msra.mxu0 %v1584
        %1586 = vmatprep.subr.mxu0 0.0
        %v1587 = vand.u32 %v203, 4294901760
        %v1588 = vsub.f32 %v203, %v1587
        %1589 = vmatpush1.msra.mxu0 %v1588
        %1590 = vmatprep.subr.mxu0 0.0
        %v1591 = vand.u32 %v204, 4294901760
        %v1592 = vsub.f32 %v204, %v1591
        %1593 = vmatpush1.msra.mxu0 %v1592
        %1594 = vmatprep.subr.mxu0 0.0
        %v1595 = vand.u32 %v205, 4294901760
        %v1596 = vsub.f32 %v205, %v1595
        %1597 = vmatpush1.msra.mxu0 %v1596
        %1598 = vmatprep.subr.mxu0 0.0
        %v1599 = vand.u32 %v206, 4294901760
        %v1600 = vsub.f32 %v206, %v1599
        %1601 = vmatpush1.msra.mxu0 %v1600
        %1602 = vmatprep.subr.mxu0 0.0
        %v1603 = vand.u32 %v207, 4294901760
        %v1604 = vsub.f32 %v207, %v1603
        %1605 = vmatpush1.msra.mxu0 %v1604
        %1606 = vmatprep.subr.mxu0 0.0
        %v1607 = vand.u32 %v208, 4294901760
        %v1608 = vsub.f32 %v208, %v1607
        %1609 = vmatpush1.msra.mxu0 %v1608
        %1610 = vmatprep.subr.mxu0 0.0
        %v1611 = vand.u32 %v209, 4294901760
        %v1612 = vsub.f32 %v209, %v1611
        %1613 = vmatpush1.msra.mxu0 %v1612
        %1614 = vmatprep.subr.mxu0 0.0
        %1615 = vmatpush1.msra.mxu0 0.0
        %1616 = vmatprep.subr.mxu0 0.0
        %1617 = vmatpush1.msra.mxu0 0.0
        %1618 = vmatprep.subr.mxu0 0.0
        %1619 = vmatpush1.msra.mxu0 0.0
        %1620 = vmatprep.subr.mxu0 0.0
        %1621 = vmatpush1.msra.mxu0 0.0
        %1622 = vmatprep.subr.mxu0 0.0
        %1623 = vmatpush1.msra.mxu0 0.0
        %1624 = vmatprep.subr.mxu0 0.0
        %1625 = vmatpush1.msra.mxu0 0.0
        %1626 = vmatprep.subr.mxu0 0.0
        %1627 = vmatpush1.msra.mxu0 0.0
        %1628 = vmatprep.subr.mxu0 0.0
        %1629 = vmatpush1.msra.mxu0 0.0
        %1630 = vmatprep.subr.mxu0 0.0
        %1631 = vmatpush1.msra.mxu0 0.0
        %1632 = vmatprep.subr.mxu0 0.0
        %1633 = vmatpush1.msra.mxu0 0.0
        %1634 = vmatprep.subr.mxu0 0.0
        %1635 = vmatpush1.msra.mxu0 0.0
        %1636 = vmatprep.subr.mxu0 0.0
        %1637 = vmatpush1.msra.mxu0 0.0
        %1638 = vmatprep.subr.mxu0 0.0
        %1639 = vmatpush1.msra.mxu0 0.0
        %1640 = vmatprep.subr.mxu0 0.0
        %1641 = vmatpush1.msra.mxu0 0.0
        %1642 = vmatprep.subr.mxu0 0.0
        %1643 = vmatpush1.msra.mxu0 0.0
        %1644 = vmatprep.subr.mxu0 0.0
        %1645 = vmatpush1.msra.mxu0 0.0
        %1646 = vmatprep.mubr.f32.mxu0 0.0
        %v1647 = vand.u32 %v1307, 4294901760
        %v1648 = vsub.f32 %v1307, %v1647
        %1649 = vmatmul.mubr.f32.gmra.mrb[0].mxu0 %v1648
        %v1650 = vpop.f32.mrb[0].mxu0
        %v1651 = vadd.f32 %v1547, %v1650
        %v1652 = vpop.f32.mrb[0].mxu0
        %1653 = vdwg.mxu0
        %1654 = vmatprep.subr.mxu0 0.0
        %v1655 = vand.u32 %v194, 4294901760
        %1656 = vmatpush1.msra.mxu0 %v1655
        %1657 = vmatprep.subr.mxu0 0.0
        %v1658 = vand.u32 %v195, 4294901760
        %1659 = vmatpush1.msra.mxu0 %v1658
        %1660 = vmatprep.subr.mxu0 0.0
        %v1661 = vand.u32 %v196, 4294901760
        %1662 = vmatpush1.msra.mxu0 %v1661
        %1663 = vmatprep.subr.mxu0 0.0
        %v1664 = vand.u32 %v197, 4294901760
        %1665 = vmatpush1.msra.mxu0 %v1664
        %1666 = vmatprep.subr.mxu0 0.0
        %v1667 = vand.u32 %v198, 4294901760
        %1668 = vmatpush1.msra.mxu0 %v1667
        %1669 = vmatprep.subr.mxu0 0.0
        %v1670 = vand.u32 %v199, 4294901760
        %1671 = vmatpush1.msra.mxu0 %v1670
        %1672 = vmatprep.subr.mxu0 0.0
        %v1673 = vand.u32 %v200, 4294901760
        %1674 = vmatpush1.msra.mxu0 %v1673
        %1675 = vmatprep.subr.mxu0 0.0
        %v1676 = vand.u32 %v201, 4294901760
        %1677 = vmatpush1.msra.mxu0 %v1676
        %1678 = vmatprep.subr.mxu0 0.0
        %v1679 = vand.u32 %v202, 4294901760
        %1680 = vmatpush1.msra.mxu0 %v1679
        %1681 = vmatprep.subr.mxu0 0.0
        %v1682 = vand.u32 %v203, 4294901760
        %1683 = vmatpush1.msra.mxu0 %v1682
        %1684 = vmatprep.subr.mxu0 0.0
        %v1685 = vand.u32 %v204, 4294901760
        %1686 = vmatpush1.msra.mxu0 %v1685
        %1687 = vmatprep.subr.mxu0 0.0
        %v1688 = vand.u32 %v205, 4294901760
        %1689 = vmatpush1.msra.mxu0 %v1688
        %1690 = vmatprep.subr.mxu0 0.0
        %v1691 = vand.u32 %v206, 4294901760
        %1692 = vmatpush1.msra.mxu0 %v1691
        %1693 = vmatprep.subr.mxu0 0.0
        %v1694 = vand.u32 %v207, 4294901760
        %1695 = vmatpush1.msra.mxu0 %v1694
        %1696 = vmatprep.subr.mxu0 0.0
        %v1697 = vand.u32 %v208, 4294901760
        %1698 = vmatpush1.msra.mxu0 %v1697
        %1699 = vmatprep.subr.mxu0 0.0
        %v1700 = vand.u32 %v209, 4294901760
        %1701 = vmatpush1.msra.mxu0 %v1700
        %1702 = vmatprep.subr.mxu0 0.0
        %1703 = vmatpush1.msra.mxu0 0.0
        %1704 = vmatprep.subr.mxu0 0.0
        %1705 = vmatpush1.msra.mxu0 0.0
        %1706 = vmatprep.subr.mxu0 0.0
        %1707 = vmatpush1.msra.mxu0 0.0
        %1708 = vmatprep.subr.mxu0 0.0
        %1709 = vmatpush1.msra.mxu0 0.0
        %1710 = vmatprep.subr.mxu0 0.0
        %1711 = vmatpush1.msra.mxu0 0.0
        %1712 = vmatprep.subr.mxu0 0.0
        %1713 = vmatpush1.msra.mxu0 0.0
        %1714 = vmatprep.subr.mxu0 0.0
        %1715 = vmatpush1.msra.mxu0 0.0
        %1716 = vmatprep.subr.mxu0 0.0
        %1717 = vmatpush1.msra.mxu0 0.0
        %1718 = vmatprep.subr.mxu0 0.0
        %1719 = vmatpush1.msra.mxu0 0.0
        %1720 = vmatprep.subr.mxu0 0.0
        %1721 = vmatpush1.msra.mxu0 0.0
        %1722 = vmatprep.subr.mxu0 0.0
        %1723 = vmatpush1.msra.mxu0 0.0
        %1724 = vmatprep.subr.mxu0 0.0
        %1725 = vmatpush1.msra.mxu0 0.0
        %1726 = vmatprep.subr.mxu0 0.0
        %1727 = vmatpush1.msra.mxu0 0.0
        %1728 = vmatprep.subr.mxu0 0.0
        %1729 = vmatpush1.msra.mxu0 0.0
        %1730 = vmatprep.subr.mxu0 0.0
        %1731 = vmatpush1.msra.mxu0 0.0
        %1732 = vmatprep.subr.mxu0 0.0
        %1733 = vmatpush1.msra.mxu0 0.0
        %1734 = vmatprep.mubr.f32.mxu0 0.0
        %v1735 = vand.u32 %v1307, 4294901760
        %v1736 = vsub.f32 %v1307, %v1735
        %v1737 = vand.u32 %v1736, 4294901760
        %1738 = vmatmul.mubr.f32.gmra.mrb[0].mxu0 %v1737
        %v1739 = vpop.f32.mrb[0].mxu0
        %v1740 = vadd.f32 %v1651, %v1739
        %v1741 = vpop.f32.mrb[0].mxu0
        %1742 = vdwg.mxu0
        %1743 = vmatprep.subr.mxu0 0.0
        %v1744 = vand.u32 %v194, 4294901760
        %v1745 = vsub.f32 %v194, %v1744
        %v1746 = vand.u32 %v1745, 4294901760
        %1747 = vmatpush1.msra.mxu0 %v1746
        %1748 = vmatprep.subr.mxu0 0.0
        %v1749 = vand.u32 %v195, 4294901760
        %v1750 = vsub.f32 %v195, %v1749
        %v1751 = vand.u32 %v1750, 4294901760
        %1752 = vmatpush1.msra.mxu0 %v1751
        %1753 = vmatprep.subr.mxu0 0.0
        %v1754 = vand.u32 %v196, 4294901760
        %v1755 = vsub.f32 %v196, %v1754
        %v1756 = vand.u32 %v1755, 4294901760
        %1757 = vmatpush1.msra.mxu0 %v1756
        %1758 = vmatprep.subr.mxu0 0.0
        %v1759 = vand.u32 %v197, 4294901760
        %v1760 = vsub.f32 %v197, %v1759
        %v1761 = vand.u32 %v1760, 4294901760
        %1762 = vmatpush1.msra.mxu0 %v1761
        %1763 = vmatprep.subr.mxu0 0.0
        %v1764 = vand.u32 %v198, 4294901760
        %v1765 = vsub.f32 %v198, %v1764
        %v1766 = vand.u32 %v1765, 4294901760
        %1767 = vmatpush1.msra.mxu0 %v1766
        %1768 = vmatprep.subr.mxu0 0.0
        %v1769 = vand.u32 %v199, 4294901760
        %v1770 = vsub.f32 %v199, %v1769
        %v1771 = vand.u32 %v1770, 4294901760
        %1772 = vmatpush1.msra.mxu0 %v1771
        %1773 = vmatprep.subr.mxu0 0.0
        %v1774 = vand.u32 %v200, 4294901760
        %v1775 = vsub.f32 %v200, %v1774
        %v1776 = vand.u32 %v1775, 4294901760
        %1777 = vmatpush1.msra.mxu0 %v1776
        %1778 = vmatprep.subr.mxu0 0.0
        %v1779 = vand.u32 %v201, 4294901760
        %v1780 = vsub.f32 %v201, %v1779
        %v1781 = vand.u32 %v1780, 4294901760
        %1782 = vmatpush1.msra.mxu0 %v1781
        %1783 = vmatprep.subr.mxu0 0.0
        %v1784 = vand.u32 %v202, 4294901760
        %v1785 = vsub.f32 %v202, %v1784
        %v1786 = vand.u32 %v1785, 4294901760
        %1787 = vmatpush1.msra.mxu0 %v1786
        %1788 = vmatprep.subr.mxu0 0.0
        %v1789 = vand.u32 %v203, 4294901760
        %v1790 = vsub.f32 %v203, %v1789
        %v1791 = vand.u32 %v1790, 4294901760
        %1792 = vmatpush1.msra.mxu0 %v1791
        %1793 = vmatprep.subr.mxu0 0.0
        %v1794 = vand.u32 %v204, 4294901760
        %v1795 = vsub.f32 %v204, %v1794
        %v1796 = vand.u32 %v1795, 4294901760
        %1797 = vmatpush1.msra.mxu0 %v1796
        %1798 = vmatprep.subr.mxu0 0.0
        %v1799 = vand.u32 %v205, 4294901760
        %v1800 = vsub.f32 %v205, %v1799
        %v1801 = vand.u32 %v1800, 4294901760
        %1802 = vmatpush1.msra.mxu0 %v1801
        %1803 = vmatprep.subr.mxu0 0.0
        %v1804 = vand.u32 %v206, 4294901760
        %v1805 = vsub.f32 %v206, %v1804
        %v1806 = vand.u32 %v1805, 4294901760
        %1807 = vmatpush1.msra.mxu0 %v1806
        %1808 = vmatprep.subr.mxu0 0.0
        %v1809 = vand.u32 %v207, 4294901760
        %v1810 = vsub.f32 %v207, %v1809
        %v1811 = vand.u32 %v1810, 4294901760
        %1812 = vmatpush1.msra.mxu0 %v1811
        %1813 = vmatprep.subr.mxu0 0.0
        %v1814 = vand.u32 %v208, 4294901760
        %v1815 = vsub.f32 %v208, %v1814
        %v1816 = vand.u32 %v1815, 4294901760
        %1817 = vmatpush1.msra.mxu0 %v1816
        %1818 = vmatprep.subr.mxu0 0.0
        %v1819 = vand.u32 %v209, 4294901760
        %v1820 = vsub.f32 %v209, %v1819
        %v1821 = vand.u32 %v1820, 4294901760
        %1822 = vmatpush1.msra.mxu0 %v1821
        %1823 = vmatprep.subr.mxu0 0.0
        %1824 = vmatpush1.msra.mxu0 0.0
        %1825 = vmatprep.subr.mxu0 0.0
        %1826 = vmatpush1.msra.mxu0 0.0
        %1827 = vmatprep.subr.mxu0 0.0
        %1828 = vmatpush1.msra.mxu0 0.0
        %1829 = vmatprep.subr.mxu0 0.0
        %1830 = vmatpush1.msra.mxu0 0.0
        %1831 = vmatprep.subr.mxu0 0.0
        %1832 = vmatpush1.msra.mxu0 0.0
        %1833 = vmatprep.subr.mxu0 0.0
        %1834 = vmatpush1.msra.mxu0 0.0
        %1835 = vmatprep.subr.mxu0 0.0
        %1836 = vmatpush1.msra.mxu0 0.0
        %1837 = vmatprep.subr.mxu0 0.0
        %1838 = vmatpush1.msra.mxu0 0.0
        %1839 = vmatprep.subr.mxu0 0.0
        %1840 = vmatpush1.msra.mxu0 0.0
        %1841 = vmatprep.subr.mxu0 0.0
        %1842 = vmatpush1.msra.mxu0 0.0
        %1843 = vmatprep.subr.mxu0 0.0
        %1844 = vmatpush1.msra.mxu0 0.0
        %1845 = vmatprep.subr.mxu0 0.0
        %1846 = vmatpush1.msra.mxu0 0.0
        %1847 = vmatprep.subr.mxu0 0.0
        %1848 = vmatpush1.msra.mxu0 0.0
        %1849 = vmatprep.subr.mxu0 0.0
        %1850 = vmatpush1.msra.mxu0 0.0
        %1851 = vmatprep.subr.mxu0 0.0
        %1852 = vmatpush1.msra.mxu0 0.0
        %1853 = vmatprep.subr.mxu0 0.0
        %1854 = vmatpush1.msra.mxu0 0.0
        %1855 = vmatprep.mubr.f32.mxu0 0.0
        %v1856 = vand.u32 %v1307, 4294901760
        %1857 = vmatmul.mubr.f32.gmra.mrb[0].mxu0 %v1856
        %v1858 = vpop.f32.mrb[0].mxu0
        %v1859 = vadd.f32 %v1740, %v1858
        %v1860 = vpop.f32.mrb[0].mxu0
        %1861 = vdwg.mxu0
        %1862 = vmatprep.subr.mxu0 0.0
        %v1863 = vand.u32 %v194, 4294901760
        %1864 = vmatpush1.msra.mxu0 %v1863
        %1865 = vmatprep.subr.mxu0 0.0
        %v1866 = vand.u32 %v195, 4294901760
        %1867 = vmatpush1.msra.mxu0 %v1866
        %1868 = vmatprep.subr.mxu0 0.0
        %v1869 = vand.u32 %v196, 4294901760
        %1870 = vmatpush1.msra.mxu0 %v1869
        %1871 = vmatprep.subr.mxu0 0.0
        %v1872 = vand.u32 %v197, 4294901760
        %1873 = vmatpush1.msra.mxu0 %v1872
        %1874 = vmatprep.subr.mxu0 0.0
        %v1875 = vand.u32 %v198, 4294901760
        %1876 = vmatpush1.msra.mxu0 %v1875
        %1877 = vmatprep.subr.mxu0 0.0
        %v1878 = vand.u32 %v199, 4294901760
        %1879 = vmatpush1.msra.mxu0 %v1878
        %1880 = vmatprep.subr.mxu0 0.0
        %v1881 = vand.u32 %v200, 4294901760
        %1882 = vmatpush1.msra.mxu0 %v1881
        %1883 = vmatprep.subr.mxu0 0.0
        %v1884 = vand.u32 %v201, 4294901760
        %1885 = vmatpush1.msra.mxu0 %v1884
        %1886 = vmatprep.subr.mxu0 0.0
        %v1887 = vand.u32 %v202, 4294901760
        %1888 = vmatpush1.msra.mxu0 %v1887
        %1889 = vmatprep.subr.mxu0 0.0
        %v1890 = vand.u32 %v203, 4294901760
        %1891 = vmatpush1.msra.mxu0 %v1890
        %1892 = vmatprep.subr.mxu0 0.0
        %v1893 = vand.u32 %v204, 4294901760
        %1894 = vmatpush1.msra.mxu0 %v1893
        %1895 = vmatprep.subr.mxu0 0.0
        %v1896 = vand.u32 %v205, 4294901760
        %1897 = vmatpush1.msra.mxu0 %v1896
        %1898 = vmatprep.subr.mxu0 0.0
        %v1899 = vand.u32 %v206, 4294901760
        %1900 = vmatpush1.msra.mxu0 %v1899
        %1901 = vmatprep.subr.mxu0 0.0
        %v1902 = vand.u32 %v207, 4294901760
        %1903 = vmatpush1.msra.mxu0 %v1902
        %1904 = vmatprep.subr.mxu0 0.0
        %v1905 = vand.u32 %v208, 4294901760
        %1906 = vmatpush1.msra.mxu0 %v1905
        %1907 = vmatprep.subr.mxu0 0.0
        %v1908 = vand.u32 %v209, 4294901760
        %1909 = vmatpush1.msra.mxu0 %v1908
        %1910 = vmatprep.subr.mxu0 0.0
        %1911 = vmatpush1.msra.mxu0 0.0
        %1912 = vmatprep.subr.mxu0 0.0
        %1913 = vmatpush1.msra.mxu0 0.0
        %1914 = vmatprep.subr.mxu0 0.0
        %1915 = vmatpush1.msra.mxu0 0.0
        %1916 = vmatprep.subr.mxu0 0.0
        %1917 = vmatpush1.msra.mxu0 0.0
        %1918 = vmatprep.subr.mxu0 0.0
        %1919 = vmatpush1.msra.mxu0 0.0
        %1920 = vmatprep.subr.mxu0 0.0
        %1921 = vmatpush1.msra.mxu0 0.0
        %1922 = vmatprep.subr.mxu0 0.0
        %1923 = vmatpush1.msra.mxu0 0.0
        %1924 = vmatprep.subr.mxu0 0.0
        %1925 = vmatpush1.msra.mxu0 0.0
        %1926 = vmatprep.subr.mxu0 0.0
        %1927 = vmatpush1.msra.mxu0 0.0
        %1928 = vmatprep.subr.mxu0 0.0
        %1929 = vmatpush1.msra.mxu0 0.0
        %1930 = vmatprep.subr.mxu0 0.0
        %1931 = vmatpush1.msra.mxu0 0.0
        %1932 = vmatprep.subr.mxu0 0.0
        %1933 = vmatpush1.msra.mxu0 0.0
        %1934 = vmatprep.subr.mxu0 0.0
        %1935 = vmatpush1.msra.mxu0 0.0
        %1936 = vmatprep.subr.mxu0 0.0
        %1937 = vmatpush1.msra.mxu0 0.0
        %1938 = vmatprep.subr.mxu0 0.0
        %1939 = vmatpush1.msra.mxu0 0.0
        %1940 = vmatprep.subr.mxu0 0.0
        %1941 = vmatpush1.msra.mxu0 0.0
        %1942 = vmatprep.mubr.f32.mxu0 0.0
        %v1943 = vand.u32 %v1307, 4294901760
        %1944 = vmatmul.mubr.f32.gmra.mrb[0].mxu0 %v1943
        %v1945 = vpop.f32.mrb[0].mxu0
        %v1946 = vadd.f32 %v1859, %v1945
        %v1947 = vpop.f32.mrb[0].mxu0
        %1948 = vdwg.mxu0
        %v1949 = vrsqrt.pop %v1946
        %v1950 = vld [vmem:[%s3] sm:$0xf]
        %v1952 = vsel %vm852, %v1949, 0
        %v1955 = vsel %vm856, %v1950, 0
        %1957 = vmatprep.subr.mxu0 0.0
        %v1958 = vand.u32 %v1955, 4294901760
        %1959 = vmatpush1.msra.mxu0 %v1958
        %1960 = vmatprep.subr.mxu0 0.0
        %1961 = vmatpush1.msra.mxu0 0.0
        %1962 = vmatprep.subr.mxu0 0.0
        %1963 = vmatpush1.msra.mxu0 0.0
        %1964 = vmatprep.subr.mxu0 0.0
        %1965 = vmatpush1.msra.mxu0 0.0
        %1966 = vmatprep.subr.mxu0 0.0
        %1967 = vmatpush1.msra.mxu0 0.0
        %1968 = vmatprep.subr.mxu0 0.0
        %1969 = vmatpush1.msra.mxu0 0.0
        %1970 = vmatprep.subr.mxu0 0.0
        %1971 = vmatpush1.msra.mxu0 0.0
        %1972 = vmatprep.subr.mxu0 0.0
        %1973 = vmatpush1.msra.mxu0 0.0
        %1974 = vmatprep.subr.mxu0 0.0
        %1975 = vmatpush1.msra.mxu0 0.0
        %1976 = vmatprep.subr.mxu0 0.0
        %1977 = vmatpush1.msra.mxu0 0.0
        %1978 = vmatprep.subr.mxu0 0.0
        %1979 = vmatpush1.msra.mxu0 0.0
        %1980 = vmatprep.subr.mxu0 0.0
        %1981 = vmatpush1.msra.mxu0 0.0
        %1982 = vmatprep.subr.mxu0 0.0
        %1983 = vmatpush1.msra.mxu0 0.0
        %1984 = vmatprep.subr.mxu0 0.0
        %1985 = vmatpush1.msra.mxu0 0.0
        %1986 = vmatprep.subr.mxu0 0.0
        %1987 = vmatpush1.msra.mxu0 0.0
        %1988 = vmatprep.subr.mxu0 0.0
        %1989 = vmatpush1.msra.mxu0 0.0
        %1990 = vmatprep.subr.mxu0 0.0
        %1991 = vmatpush1.msra.mxu0 0.0
        %1992 = vmatprep.subr.mxu0 0.0
        %1993 = vmatpush1.msra.mxu0 0.0
        %1994 = vmatprep.subr.mxu0 0.0
        %1995 = vmatpush1.msra.mxu0 0.0
        %1996 = vmatprep.subr.mxu0 0.0
        %1997 = vmatpush1.msra.mxu0 0.0
        %1998 = vmatprep.subr.mxu0 0.0
        %1999 = vmatpush1.msra.mxu0 0.0
        %2000 = vmatprep.subr.mxu0 0.0
        %2001 = vmatpush1.msra.mxu0 0.0
        %2002 = vmatprep.subr.mxu0 0.0
        %2003 = vmatpush1.msra.mxu0 0.0
        %2004 = vmatprep.subr.mxu0 0.0
        %2005 = vmatpush1.msra.mxu0 0.0
        %2006 = vmatprep.subr.mxu0 0.0
        %2007 = vmatpush1.msra.mxu0 0.0
        %2008 = vmatprep.subr.mxu0 0.0
        %2009 = vmatpush1.msra.mxu0 0.0
        %2010 = vmatprep.subr.mxu0 0.0
        %2011 = vmatpush1.msra.mxu0 0.0
        %2012 = vmatprep.subr.mxu0 0.0
        %2013 = vmatpush1.msra.mxu0 0.0
        %2014 = vmatprep.subr.mxu0 0.0
        %2015 = vmatpush1.msra.mxu0 0.0
        %2016 = vmatprep.subr.mxu0 0.0
        %2017 = vmatpush1.msra.mxu0 0.0
        %2018 = vmatprep.subr.mxu0 0.0
        %2019 = vmatpush1.msra.mxu0 0.0
        %2020 = vmatprep.subr.mxu0 0.0
        %2021 = vmatpush1.msra.mxu0 0.0
        %2022 = vmatprep.mubr.f32.mxu0 0.0
        %v2023 = vand.u32 %v1952, 4294901760
        %v2024 = vsub.f32 %v1952, %v2023
        %v2025 = vand.u32 %v2024, 4294901760
        %v2026 = vsub.f32 %v2024, %v2025
        %v2027 = vand.u32 %v2026, 4294901760
        %2028 = vmatmul.mubr.f32.gmra.mrb[0].mxu0 %v2027
        %v2029 = vpop.f32.mrb[0].mxu0
        %v2030 = vadd.f32 0.0, %v2029
        %v2031 = vpop.f32.mrb[0].mxu0
        %2032 = vdwg.mxu0
        %2033 = vmatprep.subr.mxu0 0.0
        %v2034 = vand.u32 %v1955, 4294901760
        %v2035 = vsub.f32 %v1955, %v2034
        %v2036 = vand.u32 %v2035, 4294901760
        %v2037 = vsub.f32 %v2035, %v2036
        %v2038 = vand.u32 %v2037, 4294901760
        %2039 = vmatpush1.msra.mxu0 %v2038
        %2040 = vmatprep.subr.mxu0 0.0
        %2041 = vmatpush1.msra.mxu0 0.0
        %2042 = vmatprep.subr.mxu0 0.0
        %2043 = vmatpush1.msra.mxu0 0.0
        %2044 = vmatprep.subr.mxu0 0.0
        %2045 = vmatpush1.msra.mxu0 0.0
        %2046 = vmatprep.subr.mxu0 0.0
        %2047 = vmatpush1.msra.mxu0 0.0
        %2048 = vmatprep.subr.mxu0 0.0
        %2049 = vmatpush1.msra.mxu0 0.0
        %2050 = vmatprep.subr.mxu0 0.0
        %2051 = vmatpush1.msra.mxu0 0.0
        %2052 = vmatprep.subr.mxu0 0.0
        %2053 = vmatpush1.msra.mxu0 0.0
        %2054 = vmatprep.subr.mxu0 0.0
        %2055 = vmatpush1.msra.mxu0 0.0
        %2056 = vmatprep.subr.mxu0 0.0
        %2057 = vmatpush1.msra.mxu0 0.0
        %2058 = vmatprep.subr.mxu0 0.0
        %2059 = vmatpush1.msra.mxu0 0.0
        %2060 = vmatprep.subr.mxu0 0.0
        %2061 = vmatpush1.msra.mxu0 0.0
        %2062 = vmatprep.subr.mxu0 0.0
        %2063 = vmatpush1.msra.mxu0 0.0
        %2064 = vmatprep.subr.mxu0 0.0
        %2065 = vmatpush1.msra.mxu0 0.0
        %2066 = vmatprep.subr.mxu0 0.0
        %2067 = vmatpush1.msra.mxu0 0.0
        %2068 = vmatprep.subr.mxu0 0.0
        %2069 = vmatpush1.msra.mxu0 0.0
        %2070 = vmatprep.subr.mxu0 0.0
        %2071 = vmatpush1.msra.mxu0 0.0
        %2072 = vmatprep.subr.mxu0 0.0
        %2073 = vmatpush1.msra.mxu0 0.0
        %2074 = vmatprep.subr.mxu0 0.0
        %2075 = vmatpush1.msra.mxu0 0.0
        %2076 = vmatprep.subr.mxu0 0.0
        %2077 = vmatpush1.msra.mxu0 0.0
        %2078 = vmatprep.subr.mxu0 0.0
        %2079 = vmatpush1.msra.mxu0 0.0
        %2080 = vmatprep.subr.mxu0 0.0
        %2081 = vmatpush1.msra.mxu0 0.0
        %2082 = vmatprep.subr.mxu0 0.0
        %2083 = vmatpush1.msra.mxu0 0.0
        %2084 = vmatprep.subr.mxu0 0.0
        %2085 = vmatpush1.msra.mxu0 0.0
        %2086 = vmatprep.subr.mxu0 0.0
        %2087 = vmatpush1.msra.mxu0 0.0
        %2088 = vmatprep.subr.mxu0 0.0
        %2089 = vmatpush1.msra.mxu0 0.0
        %2090 = vmatprep.subr.mxu0 0.0
        %2091 = vmatpush1.msra.mxu0 0.0
        %2092 = vmatprep.subr.mxu0 0.0
        %2093 = vmatpush1.msra.mxu0 0.0
        %2094 = vmatprep.subr.mxu0 0.0
        %2095 = vmatpush1.msra.mxu0 0.0
        %2096 = vmatprep.subr.mxu0 0.0
        %2097 = vmatpush1.msra.mxu0 0.0
        %2098 = vmatprep.subr.mxu0 0.0
        %2099 = vmatpush1.msra.mxu0 0.0
        %2100 = vmatprep.subr.mxu0 0.0
        %2101 = vmatpush1.msra.mxu0 0.0
        %2102 = vmatprep.mubr.f32.mxu0 0.0
        %v2103 = vand.u32 %v1952, 4294901760
        %2104 = vmatmul.mubr.f32.gmra.mrb[0].mxu0 %v2103
        %v2105 = vpop.f32.mrb[0].mxu0
        %v2106 = vadd.f32 %v2030, %v2105
        %v2107 = vpop.f32.mrb[0].mxu0
        %2108 = vdwg.mxu0
        %2109 = vmatprep.subr.mxu0 0.0
        %v2110 = vand.u32 %v1955, 4294901760
        %v2111 = vsub.f32 %v1955, %v2110
        %2112 = vmatpush1.msra.mxu0 %v2111
        %2113 = vmatprep.subr.mxu0 0.0
        %2114 = vmatpush1.msra.mxu0 0.0
        %2115 = vmatprep.subr.mxu0 0.0
        %2116 = vmatpush1.msra.mxu0 0.0
        %2117 = vmatprep.subr.mxu0 0.0
        %2118 = vmatpush1.msra.mxu0 0.0
        %2119 = vmatprep.subr.mxu0 0.0
        %2120 = vmatpush1.msra.mxu0 0.0
        %2121 = vmatprep.subr.mxu0 0.0
        %2122 = vmatpush1.msra.mxu0 0.0
        %2123 = vmatprep.subr.mxu0 0.0
        %2124 = vmatpush1.msra.mxu0 0.0
        %2125 = vmatprep.subr.mxu0 0.0
        %2126 = vmatpush1.msra.mxu0 0.0
        %2127 = vmatprep.subr.mxu0 0.0
        %2128 = vmatpush1.msra.mxu0 0.0
        %2129 = vmatprep.subr.mxu0 0.0
        %2130 = vmatpush1.msra.mxu0 0.0
        %2131 = vmatprep.subr.mxu0 0.0
        %2132 = vmatpush1.msra.mxu0 0.0
        %2133 = vmatprep.subr.mxu0 0.0
        %2134 = vmatpush1.msra.mxu0 0.0
        %2135 = vmatprep.subr.mxu0 0.0
        %2136 = vmatpush1.msra.mxu0 0.0
        %2137 = vmatprep.subr.mxu0 0.0
        %2138 = vmatpush1.msra.mxu0 0.0
        %2139 = vmatprep.subr.mxu0 0.0
        %2140 = vmatpush1.msra.mxu0 0.0
        %2141 = vmatprep.subr.mxu0 0.0
        %2142 = vmatpush1.msra.mxu0 0.0
        %2143 = vmatprep.subr.mxu0 0.0
        %2144 = vmatpush1.msra.mxu0 0.0
        %2145 = vmatprep.subr.mxu0 0.0
        %2146 = vmatpush1.msra.mxu0 0.0
        %2147 = vmatprep.subr.mxu0 0.0
        %2148 = vmatpush1.msra.mxu0 0.0
        %2149 = vmatprep.subr.mxu0 0.0
        %2150 = vmatpush1.msra.mxu0 0.0
        %2151 = vmatprep.subr.mxu0 0.0
        %2152 = vmatpush1.msra.mxu0 0.0
        %2153 = vmatprep.subr.mxu0 0.0
        %2154 = vmatpush1.msra.mxu0 0.0
        %2155 = vmatprep.subr.mxu0 0.0
        %2156 = vmatpush1.msra.mxu0 0.0
        %2157 = vmatprep.subr.mxu0 0.0
        %2158 = vmatpush1.msra.mxu0 0.0
        %2159 = vmatprep.subr.mxu0 0.0
        %2160 = vmatpush1.msra.mxu0 0.0
        %2161 = vmatprep.subr.mxu0 0.0
        %2162 = vmatpush1.msra.mxu0 0.0
        %2163 = vmatprep.subr.mxu0 0.0
        %2164 = vmatpush1.msra.mxu0 0.0
        %2165 = vmatprep.subr.mxu0 0.0
        %2166 = vmatpush1.msra.mxu0 0.0
        %2167 = vmatprep.subr.mxu0 0.0
        %2168 = vmatpush1.msra.mxu0 0.0
        %2169 = vmatprep.subr.mxu0 0.0
        %2170 = vmatpush1.msra.mxu0 0.0
        %2171 = vmatprep.subr.mxu0 0.0
        %2172 = vmatpush1.msra.mxu0 0.0
        %2173 = vmatprep.subr.mxu0 0.0
        %2174 = vmatpush1.msra.mxu0 0.0
        %2175 = vmatprep.mubr.f32.mxu0 0.0
        %v2176 = vand.u32 %v1952, 4294901760
        %v2177 = vsub.f32 %v1952, %v2176
        %2178 = vmatmul.mubr.f32.gmra.mrb[0].mxu0 %v2177
        %v2179 = vpop.f32.mrb[0].mxu0
        %v2180 = vadd.f32 %v2106, %v2179
        %v2181 = vpop.f32.mrb[0].mxu0
        %2182 = vdwg.mxu0
        %2183 = vmatprep.subr.mxu0 0.0
        %v2184 = vand.u32 %v1955, 4294901760
        %2185 = vmatpush1.msra.mxu0 %v2184
        %2186 = vmatprep.subr.mxu0 0.0
        %2187 = vmatpush1.msra.mxu0 0.0
        %2188 = vmatprep.subr.mxu0 0.0
        %2189 = vmatpush1.msra.mxu0 0.0
        %2190 = vmatprep.subr.mxu0 0.0
        %2191 = vmatpush1.msra.mxu0 0.0
        %2192 = vmatprep.subr.mxu0 0.0
        %2193 = vmatpush1.msra.mxu0 0.0
        %2194 = vmatprep.subr.mxu0 0.0
        %2195 = vmatpush1.msra.mxu0 0.0
        %2196 = vmatprep.subr.mxu0 0.0
        %2197 = vmatpush1.msra.mxu0 0.0
        %2198 = vmatprep.subr.mxu0 0.0
        %2199 = vmatpush1.msra.mxu0 0.0
        %2200 = vmatprep.subr.mxu0 0.0
        %2201 = vmatpush1.msra.mxu0 0.0
        %2202 = vmatprep.subr.mxu0 0.0
        %2203 = vmatpush1.msra.mxu0 0.0
        %2204 = vmatprep.subr.mxu0 0.0
        %2205 = vmatpush1.msra.mxu0 0.0
        %2206 = vmatprep.subr.mxu0 0.0
        %2207 = vmatpush1.msra.mxu0 0.0
        %2208 = vmatprep.subr.mxu0 0.0
        %2209 = vmatpush1.msra.mxu0 0.0
        %2210 = vmatprep.subr.mxu0 0.0
        %2211 = vmatpush1.msra.mxu0 0.0
        %2212 = vmatprep.subr.mxu0 0.0
        %2213 = vmatpush1.msra.mxu0 0.0
        %2214 = vmatprep.subr.mxu0 0.0
        %2215 = vmatpush1.msra.mxu0 0.0
        %2216 = vmatprep.subr.mxu0 0.0
        %2217 = vmatpush1.msra.mxu0 0.0
        %2218 = vmatprep.subr.mxu0 0.0
        %2219 = vmatpush1.msra.mxu0 0.0
        %2220 = vmatprep.subr.mxu0 0.0
        %2221 = vmatpush1.msra.mxu0 0.0
        %2222 = vmatprep.subr.mxu0 0.0
        %2223 = vmatpush1.msra.mxu0 0.0
        %2224 = vmatprep.subr.mxu0 0.0
        %2225 = vmatpush1.msra.mxu0 0.0
        %2226 = vmatprep.subr.mxu0 0.0
        %2227 = vmatpush1.msra.mxu0 0.0
        %2228 = vmatprep.subr.mxu0 0.0
        %2229 = vmatpush1.msra.mxu0 0.0
        %2230 = vmatprep.subr.mxu0 0.0
        %2231 = vmatpush1.msra.mxu0 0.0
        %2232 = vmatprep.subr.mxu0 0.0
        %2233 = vmatpush1.msra.mxu0 0.0
        %2234 = vmatprep.subr.mxu0 0.0
        %2235 = vmatpush1.msra.mxu0 0.0
        %2236 = vmatprep.subr.mxu0 0.0
        %2237 = vmatpush1.msra.mxu0 0.0
        %2238 = vmatprep.subr.mxu0 0.0
        %2239 = vmatpush1.msra.mxu0 0.0
        %2240 = vmatprep.subr.mxu0 0.0
        %2241 = vmatpush1.msra.mxu0 0.0
        %2242 = vmatprep.subr.mxu0 0.0
        %2243 = vmatpush1.msra.mxu0 0.0
        %2244 = vmatprep.subr.mxu0 0.0
        %2245 = vmatpush1.msra.mxu0 0.0
        %2246 = vmatprep.subr.mxu0 0.0
        %2247 = vmatpush1.msra.mxu0 0.0
        %2248 = vmatprep.mubr.f32.mxu0 0.0
        %v2249 = vand.u32 %v1952, 4294901760
        %v2250 = vsub.f32 %v1952, %v2249
        %v2251 = vand.u32 %v2250, 4294901760
        %2252 = vmatmul.mubr.f32.gmra.mrb[0].mxu0 %v2251
        %v2253 = vpop.f32.mrb[0].mxu0
        %v2254 = vadd.f32 %v2180, %v2253
        %v2255 = vpop.f32.mrb[0].mxu0
        %2256 = vdwg.mxu0
        %2257 = vmatprep.subr.mxu0 0.0
        %v2258 = vand.u32 %v1955, 4294901760
        %v2259 = vsub.f32 %v1955, %v2258
        %v2260 = vand.u32 %v2259, 4294901760
        %2261 = vmatpush1.msra.mxu0 %v2260
        %2262 = vmatprep.subr.mxu0 0.0
        %2263 = vmatpush1.msra.mxu0 0.0
        %2264 = vmatprep.subr.mxu0 0.0
        %2265 = vmatpush1.msra.mxu0 0.0
        %2266 = vmatprep.subr.mxu0 0.0
        %2267 = vmatpush1.msra.mxu0 0.0
        %2268 = vmatprep.subr.mxu0 0.0
        %2269 = vmatpush1.msra.mxu0 0.0
        %2270 = vmatprep.subr.mxu0 0.0
        %2271 = vmatpush1.msra.mxu0 0.0
        %2272 = vmatprep.subr.mxu0 0.0
        %2273 = vmatpush1.msra.mxu0 0.0
        %2274 = vmatprep.subr.mxu0 0.0
        %2275 = vmatpush1.msra.mxu0 0.0
        %2276 = vmatprep.subr.mxu0 0.0
        %2277 = vmatpush1.msra.mxu0 0.0
        %2278 = vmatprep.subr.mxu0 0.0
        %2279 = vmatpush1.msra.mxu0 0.0
        %2280 = vmatprep.subr.mxu0 0.0
        %2281 = vmatpush1.msra.mxu0 0.0
        %2282 = vmatprep.subr.mxu0 0.0
        %2283 = vmatpush1.msra.mxu0 0.0
        %2284 = vmatprep.subr.mxu0 0.0
        %2285 = vmatpush1.msra.mxu0 0.0
        %2286 = vmatprep.subr.mxu0 0.0
        %2287 = vmatpush1.msra.mxu0 0.0
        %2288 = vmatprep.subr.mxu0 0.0
        %2289 = vmatpush1.msra.mxu0 0.0
        %2290 = vmatprep.subr.mxu0 0.0
        %2291 = vmatpush1.msra.mxu0 0.0
        %2292 = vmatprep.subr.mxu0 0.0
        %2293 = vmatpush1.msra.mxu0 0.0
        %2294 = vmatprep.subr.mxu0 0.0
        %2295 = vmatpush1.msra.mxu0 0.0
        %2296 = vmatprep.subr.mxu0 0.0
        %2297 = vmatpush1.msra.mxu0 0.0
        %2298 = vmatprep.subr.mxu0 0.0
        %2299 = vmatpush1.msra.mxu0 0.0
        %2300 = vmatprep.subr.mxu0 0.0
        %2301 = vmatpush1.msra.mxu0 0.0
        %2302 = vmatprep.subr.mxu0 0.0
        %2303 = vmatpush1.msra.mxu0 0.0
        %2304 = vmatprep.subr.mxu0 0.0
        %2305 = vmatpush1.msra.mxu0 0.0
        %2306 = vmatprep.subr.mxu0 0.0
        %2307 = vmatpush1.msra.mxu0 0.0
        %2308 = vmatprep.subr.mxu0 0.0
        %2309 = vmatpush1.msra.mxu0 0.0
        %2310 = vmatprep.subr.mxu0 0.0
        %2311 = vmatpush1.msra.mxu0 0.0
        %2312 = vmatprep.subr.mxu0 0.0
        %2313 = vmatpush1.msra.mxu0 0.0
        %2314 = vmatprep.subr.mxu0 0.0
        %2315 = vmatpush1.msra.mxu0 0.0
        %2316 = vmatprep.subr.mxu0 0.0
        %2317 = vmatpush1.msra.mxu0 0.0
        %2318 = vmatprep.subr.mxu0 0.0
        %2319 = vmatpush1.msra.mxu0 0.0
        %2320 = vmatprep.subr.mxu0 0.0
        %2321 = vmatpush1.msra.mxu0 0.0
        %2322 = vmatprep.subr.mxu0 0.0
        %2323 = vmatpush1.msra.mxu0 0.0
        %2324 = vmatprep.mubr.f32.mxu0 0.0
        %v2325 = vand.u32 %v1952, 4294901760
        %2326 = vmatmul.mubr.f32.gmra.mrb[0].mxu0 %v2325
        %v2327 = vpop.f32.mrb[0].mxu0
        %v2328 = vadd.f32 %v2254, %v2327
        %v2329 = vpop.f32.mrb[0].mxu0
        %2330 = vdwg.mxu0
        %2331 = vmatprep.subr.mxu0 0.0
        %v2332 = vand.u32 %v1955, 4294901760
        %2333 = vmatpush1.msra.mxu0 %v2332
        %2334 = vmatprep.subr.mxu0 0.0
        %2335 = vmatpush1.msra.mxu0 0.0
        %2336 = vmatprep.subr.mxu0 0.0
        %2337 = vmatpush1.msra.mxu0 0.0
        %2338 = vmatprep.subr.mxu0 0.0
        %2339 = vmatpush1.msra.mxu0 0.0
        %2340 = vmatprep.subr.mxu0 0.0
        %2341 = vmatpush1.msra.mxu0 0.0
        %2342 = vmatprep.subr.mxu0 0.0
        %2343 = vmatpush1.msra.mxu0 0.0
        %2344 = vmatprep.subr.mxu0 0.0
        %2345 = vmatpush1.msra.mxu0 0.0
        %2346 = vmatprep.subr.mxu0 0.0
        %2347 = vmatpush1.msra.mxu0 0.0
        %2348 = vmatprep.subr.mxu0 0.0
        %2349 = vmatpush1.msra.mxu0 0.0
        %2350 = vmatprep.subr.mxu0 0.0
        %2351 = vmatpush1.msra.mxu0 0.0
        %2352 = vmatprep.subr.mxu0 0.0
        %2353 = vmatpush1.msra.mxu0 0.0
        %2354 = vmatprep.subr.mxu0 0.0
        %2355 = vmatpush1.msra.mxu0 0.0
        %2356 = vmatprep.subr.mxu0 0.0
        %2357 = vmatpush1.msra.mxu0 0.0
        %2358 = vmatprep.subr.mxu0 0.0
        %2359 = vmatpush1.msra.mxu0 0.0
        %2360 = vmatprep.subr.mxu0 0.0
        %2361 = vmatpush1.msra.mxu0 0.0
        %2362 = vmatprep.subr.mxu0 0.0
        %2363 = vmatpush1.msra.mxu0 0.0
        %2364 = vmatprep.subr.mxu0 0.0
        %2365 = vmatpush1.msra.mxu0 0.0
        %2366 = vmatprep.subr.mxu0 0.0
        %2367 = vmatpush1.msra.mxu0 0.0
        %2368 = vmatprep.subr.mxu0 0.0
        %2369 = vmatpush1.msra.mxu0 0.0
        %2370 = vmatprep.subr.mxu0 0.0
        %2371 = vmatpush1.msra.mxu0 0.0
        %2372 = vmatprep.subr.mxu0 0.0
        %2373 = vmatpush1.msra.mxu0 0.0
        %2374 = vmatprep.subr.mxu0 0.0
        %2375 = vmatpush1.msra.mxu0 0.0
        %2376 = vmatprep.subr.mxu0 0.0
        %2377 = vmatpush1.msra.mxu0 0.0
        %2378 = vmatprep.subr.mxu0 0.0
        %2379 = vmatpush1.msra.mxu0 0.0
        %2380 = vmatprep.subr.mxu0 0.0
        %2381 = vmatpush1.msra.mxu0 0.0
        %2382 = vmatprep.subr.mxu0 0.0
        %2383 = vmatpush1.msra.mxu0 0.0
        %2384 = vmatprep.subr.mxu0 0.0
        %2385 = vmatpush1.msra.mxu0 0.0
        %2386 = vmatprep.subr.mxu0 0.0
        %2387 = vmatpush1.msra.mxu0 0.0
        %2388 = vmatprep.subr.mxu0 0.0
        %2389 = vmatpush1.msra.mxu0 0.0
        %2390 = vmatprep.subr.mxu0 0.0
        %2391 = vmatpush1.msra.mxu0 0.0
        %2392 = vmatprep.subr.mxu0 0.0
        %2393 = vmatpush1.msra.mxu0 0.0
        %2394 = vmatprep.subr.mxu0 0.0
        %2395 = vmatpush1.msra.mxu0 0.0
        %2396 = vmatprep.mubr.f32.mxu0 0.0
        %v2397 = vand.u32 %v1952, 4294901760
        %2398 = vmatmul.mubr.f32.gmra.mrb[0].mxu0 %v2397
        %v2399 = vpop.f32.mrb[0].mxu0
        %v2400 = vadd.f32 %v2328, %v2399
        %v2401 = vpop.f32.mrb[0].mxu0
        %2402 = vdwg.mxu0
        %v2403 = vmul.f32 %v1306, %v2400
        %2404 = vst [vmem:[%s188] sm:$0xff] %v2403
        %s2405 = sand.u32 %s115, 1
        %s2406 = scalar_lea.sflag [#allocation3], %s2405
        %s2407 = sand.u32 %s115, 1
        %s2408 = smul.addr %s2407, 8
        %s2409 = scalar_lea.vmem [#allocation2], %s2408
        // Predicated region
        $region37: #{tpu_custom_call.1} parent=35 // pred_check
          %p2410 = pneg %p125
        $region38: #{tpu_custom_call.1} parent=35 // pred_check_branch
          %2412 = sbr.rel (%p2410) target = $region40
        $region39: #{tpu_custom_call.1} parent=35 // pred_region
          %s2414 = ssub.s32 128, 128
          %2415 = vsyncadd %s2406, %s2414
          %s2416 = smul.addr %s18, 128
          %s2417 = scalar_lea.hbm %s4, %s2416
          %s2419 = sshll.u32 %s2409, 4
          %s2420 = int_to_ptr.vmem [resolvable:$true] %s2419
          %2422 = dma.vmem_to_hbm [thread:$0]  %s2420, 128, %s2417, %s2406
        $region40: #{tpu_custom_call.1} parent=35 // pred_fallthru
          _
      $region36: #{tpu_custom_call.1} parent=5 // pred_fallthru
        _
      %p2423 = scmp.le.s32.totalorder 2, %s13
      // Predicated region
      $region41: #{tpu_custom_call.1} parent=5 // pred_check
        %p2424 = pneg %p2423
      $region42: #{tpu_custom_call.1} parent=5 // pred_check_branch
        %2426 = sbr.rel (%p2424) target = $region44
      $region43: #{tpu_custom_call.1} parent=5 // pred_region
        %s2427 = ssub.s32 %s13, 2
        // Predicated region
        $region45: #{tpu_custom_call.1} parent=43 // pred_check
          %p2428 = pneg %p131
        $region46: #{tpu_custom_call.1} parent=43 // pred_check_branch
          %2430 = sbr.rel (%p2428) target = $region48
        $region47: #{tpu_custom_call.1} parent=43 // pred_region
          %s2431 = sand.u32 %s116, 1
          %s2432 = scalar_lea.sflag [#allocation3], %s2431
          %s2433 = sand.u32 %s116, 1
          %s2434 = smul.addr %s2433, 8
          %s2435 = scalar_lea.vmem [#allocation2], %s2434
          %2436 = dma.done %s2432, 128
        $region48: #{tpu_custom_call.1} parent=43 // pred_fallthru
          _
      $region44: #{tpu_custom_call.1} parent=5 // pred_fallthru
        _
    $region6: #{tpu_custom_call.1} parent=1 // loop_footer
      %s17 = sadd.s32 1, %s13
    $region7: #{tpu_custom_call.1} parent=1 // loop_footer_branch
      %12 = sbr.rel target = $region3
    $region8: #{tpu_custom_call.1} parent=1 // loop_exit
      _
    %2437 = vsyncpa [#allocation3], 1
    %s2438 = scalar_lea.sflag [#allocation3], 1
    %2439 = vsyncpa %s2438, 1

</llo_original>
